<compile_context>
chip_gen: v6e
topology: v6e:2x2x1
jax: 0.10.0
libtpu: 0.0.40
codegen_flags: <defaults>
</compile_context>

<pallas_src>
import functools

import jax
import jax.numpy as jnp
from jax import lax
from jax.experimental import pallas as pl
from jax.experimental.pallas import tpu as pltpu


def _info_agg_kernel(x_ref, w1t_ref, w2_ref, wc_ref, o_ref, xs_ref,
                     *, C, H, W, K, SPAD):
    # x_ref  : (1, C, H*W)          VMEM  lane-dense image
    # w1t_ref: (C, C//2)            VMEM  first FC weight, transposed (in, out)
    # w2_ref : (C, C//2)            VMEM  second FC weight, PyTorch (out, in)
    # wc_ref : (C, K*K)             VMEM  7x7 conv weight, taps flattened per channel
    # o_ref  : (1, C, H*W)          VMEM
    # xs_ref : (C, H*W + 2*SPAD)    VMEM scratch: [zeros | image rows flat | zeros]
    HW = H * W
    P = K // 2

    x = x_ref[0].astype(jnp.float32)                              # (C, HW)

    # ---- Channel aggregation (SE gate): VPU broadcast-mult + reduces, no MXU --
    mean = jnp.sum(x, axis=1, keepdims=True) * (1.0 / HW)         # (C, 1)
    h = jnp.sum(w1t_ref[...].astype(jnp.float32) * mean,
                axis=0, keepdims=True)                            # (1, C//2)
    h = jnp.maximum(h, 0.0)
    y_ch = jax.nn.sigmoid(
        jnp.sum(w2_ref[...].astype(jnp.float32) * h,
                axis=1, keepdims=True))                           # (C, 1)

    # ---- Spatial aggregation: 7x7, C->1 conv as 49 shifted-window FMAs -------
    # Scratch layout per channel: [SPAD zeros | x row-major (HW) | SPAD zeros].
    # A window starting at SPAD + dh*W + dw is x shifted by (dh, dw) with zero
    # fill for out-of-range rows; out-of-range columns are masked per kw below.
    xs_ref[:, 0:SPAD] = jnp.zeros((C, SPAD), jnp.float32)
    xs_ref[:, SPAD + HW:SPAD + HW + SPAD] = jnp.zeros((C, SPAD), jnp.float32)
    xs_ref[:, SPAD:SPAD + HW] = x

    w_idx = lax.broadcasted_iota(jnp.int32, (1, HW), 1) % W       # column of each flat pos
    col_mask = [((w_idx + (kw - P) >= 0) & (w_idx + (kw - P) < W)
                 ).astype(jnp.float32) for kw in range(K)]        # (1, HW) each, hoisted

    wc = wc_ref[...].astype(jnp.float32)                          # (C, K*K)
    acc = jnp.zeros((C, HW), jnp.float32)
    for kh in range(K):
        row_start = SPAD + (kh - P) * W
        for kw in range(K):
            start = row_start + (kw - P)
            shifted = xs_ref[:, start:start + HW]                 # (C, HW)
            if kw != P:                                           # center column: mask is all-ones
                shifted = shifted * col_mask[kw]
            t = kh * K + kw
            acc = acc + wc[:, t:t + 1] * shifted                  # per-channel FMA
    y_sp = jax.nn.sigmoid(jnp.sum(acc, axis=0, keepdims=True))    # (1, HW)

    # ---- Factored epilogue: x*y_ch + x*y_sp == x*(y_ch + y_sp), lane-dense store
    o_ref[0] = (x * (y_ch + y_sp)).astype(o_ref.dtype)


def information_aggregation(x, w_fc1, w_fc2, w_conv):
    """x: (B, C, H, W).  w_fc1: (C//2, C), w_fc2: (C, C//2) (PyTorch Linear
    weights, bias=False).  w_conv: (1, C, 7, 7) (PyTorch Conv2d weight)."""
    B, C, H, W = x.shape
    K = w_conv.shape[-1]
    P = K // 2
    HW = H * W
    SPAD = ((P * (W + 1) + 127) // 128) * 128     # flat zero-pad per side, lane-aligned

    x_flat = x.reshape(B, C, HW)                                  # free: contiguous view
    w1t = jnp.transpose(w_fc1).astype(jnp.float32)                # (C, C//2)
    w2 = w_fc2.astype(jnp.float32)                                # (C, C//2)
    wc = w_conv.reshape(C, K * K).astype(jnp.float32)             # (C, K*K)

    kernel = functools.partial(_info_agg_kernel, C=C, H=H, W=W, K=K, SPAD=SPAD)

    out_flat = pl.pallas_call(
        kernel,
        out_shape=jax.ShapeDtypeStruct((B, C, HW), x.dtype),
        grid_spec=pltpu.PrefetchScalarGridSpec(
            num_scalar_prefetch=0,
            grid=(B,),
            in_specs=[
                pl.BlockSpec((1, C, HW), lambda b: (b, 0, 0)),
                pl.BlockSpec((C, C // 2), lambda b: (0, 0)),      # grid-invariant weights
                pl.BlockSpec((C, C // 2), lambda b: (0, 0)),
                pl.BlockSpec((C, K * K), lambda b: (0, 0)),
            ],
            out_specs=pl.BlockSpec((1, C, HW), lambda b: (b, 0, 0)),
            scratch_shapes=[pltpu.VMEM((C, HW + 2 * SPAD), jnp.float32)],
        ),
        compiler_params=pltpu.CompilerParams(
            dimension_semantics=("parallel",)),
    )(x_flat, w1t, w2, wc)
    # TODO(synk): for production C/H/W, add a second (row-band) parallel grid axis
    # and an explicit vmem_limit_bytes; unnecessary at these small shapes.
    return out_flat.reshape(B, C, H, W)


def _reference(x, w_fc1, w_fc2, w_conv):
    # Pure-JAX reference of the PyTorch forward pass, for verification.
    mean = jnp.mean(x, axis=(2, 3))                               # (B, C)
    h = jnp.maximum(mean @ w_fc1.T, 0.0)                          # (B, C//2)
    y_ch = jax.nn.sigmoid(h @ w_fc2.T)                            # (B, C)
    x_channel = x * y_ch[:, :, None, None]
    y_sp = lax.conv_general_dilated(
        x, w_conv, window_strides=(1, 1), padding=((3, 3), (3, 3)),
        dimension_numbers=("NCHW", "OIHW", "NCHW"))               # (B,1,H,W)
    x_spatial = x * jax.nn.sigmoid(y_sp)
    return x_channel + x_spatial


if __name__ == "__main__":
    B, C, H, W = 2, 4, 16, 16
    key = jax.random.PRNGKey(0)
    kx, k1, k2, k3 = jax.random.split(key, 4)

    x = jax.random.normal(kx, (B, C, H, W), dtype=jnp.float32)
    # Deterministic synthetic parameters (shapes from the module __init__).
    w_fc1 = jax.random.normal(k1, (C // 2, C), dtype=jnp.float32) * 0.5
    w_fc2 = jax.random.normal(k2, (C, C // 2), dtype=jnp.float32) * 0.5
    w_conv = jax.random.normal(k3, (1, C, 7, 7), dtype=jnp.float32) * 0.1

    out = information_aggregation(x, w_fc1, w_fc2, w_conv)
    out = jax.block_until_ready(out)

    ref = _reference(x, w_fc1, w_fc2, w_conv)
    assert out.shape == (B, C, H, W)
    assert jnp.allclose(out, ref, atol=1e-4, rtol=1e-4), "mismatch vs reference"

    print("KERNEL_OK")
</pallas_src>

<mosaic_0001>
module attributes {stable_mosaic.version = 11 : i64} {
  func.func @_info_agg_kernel(%arg0: i32, %arg1: memref<1x4x256xf32, #tpu.memory_space<vmem>>, %arg2: memref<4x2xf32, #tpu.memory_space<vmem>>, %arg3: memref<4x2xf32, #tpu.memory_space<vmem>>, %arg4: memref<4x49xf32, #tpu.memory_space<vmem>>, %arg5: memref<1x4x256xf32, #tpu.memory_space<vmem>>, %arg6: memref<4x512xf32, #tpu.memory_space<vmem>>) attributes {dimension_semantics = [#tpu.dimension_semantics<parallel>], iteration_bounds = array<i64: 2>, scalar_prefetch = 0 : i64, scratch_operands = 1 : i64, tpu.core_type = #tpu.core_type<tc>, window_params = [{transform_indices = @transform_0, window_bounds = array<i64: 1, 4, 256>}, {pipeline_mode = #tpu.pipeline_mode<synchronous>, transform_indices = @transform_1, window_bounds = array<i64: 4, 2>}, {pipeline_mode = #tpu.pipeline_mode<synchronous>, transform_indices = @transform_2, window_bounds = array<i64: 4, 2>}, {pipeline_mode = #tpu.pipeline_mode<synchronous>, transform_indices = @transform_3, window_bounds = array<i64: 4, 49>}, {transform_indices = @transform_4, window_bounds = array<i64: 1, 4, 256>}]} {
    %c0 = arith.constant 0 : index
    %c0_0 = arith.constant 0 : index
    %c0_1 = arith.constant 0 : index
    %0 = vector.load %arg1[%c0, %c0_0, %c0_1] : memref<1x4x256xf32, #tpu.memory_space<vmem>>, vector<1x4x256xf32>
    %1 = vector.shape_cast %0 : vector<1x4x256xf32> to vector<4x256xf32>
    %cst = arith.constant dense<0.000000e+00> : vector<4xf32>
    %2 = vector.multi_reduction <add>, %1, %cst [1] : vector<4x256xf32> to vector<4xf32>
    %3 = vector.shape_cast %2 : vector<4xf32> to vector<4x1xf32>
    %cst_2 = arith.constant 3.906250e-03 : f32
    %4 = vector.broadcast %cst_2 : f32 to vector<4x1xf32>
    %5 = arith.mulf %3, %4 : vector<4x1xf32>
    %c0_3 = arith.constant 0 : index
    %c0_4 = arith.constant 0 : index
    %6 = vector.load %arg2[%c0_3, %c0_4] : memref<4x2xf32, #tpu.memory_space<vmem>>, vector<4x2xf32>
    %7 = vector.broadcast %5 : vector<4x1xf32> to vector<4x2xf32>
    %8 = arith.mulf %6, %7 : vector<4x2xf32>
    %cst_5 = arith.constant dense<0.000000e+00> : vector<2xf32>
    %9 = vector.multi_reduction <add>, %8, %cst_5 [0] : vector<4x2xf32> to vector<2xf32>
    %10 = vector.shape_cast %9 : vector<2xf32> to vector<1x2xf32>
    %cst_6 = arith.constant 0.000000e+00 : f32
    %11 = vector.broadcast %cst_6 : f32 to vector<1x2xf32>
    %12 = arith.maximumf %10, %11 : vector<1x2xf32>
    %c0_7 = arith.constant 0 : index
    %c0_8 = arith.constant 0 : index
    %13 = vector.load %arg3[%c0_7, %c0_8] : memref<4x2xf32, #tpu.memory_space<vmem>>, vector<4x2xf32>
    %14 = vector.broadcast %12 : vector<1x2xf32> to vector<4x2xf32>
    %15 = arith.mulf %13, %14 : vector<4x2xf32>
    %cst_9 = arith.constant dense<0.000000e+00> : vector<4xf32>
    %16 = vector.multi_reduction <add>, %15, %cst_9 [1] : vector<4x2xf32> to vector<4xf32>
    %17 = vector.shape_cast %16 : vector<4xf32> to vector<4x1xf32>
    %18 = arith.negf %17 : vector<4x1xf32>
    %19 = math.exp %18 : vector<4x1xf32>
    %cst_10 = arith.constant 1.000000e+00 : f32
    %20 = vector.broadcast %cst_10 : f32 to vector<4x1xf32>
    %21 = arith.addf %20, %19 : vector<4x1xf32>
    %22 = arith.divf %20, %21 : vector<4x1xf32>
    %cst_11 = arith.constant 0.000000e+00 : f32
    %23 = vector.broadcast %cst_11 : f32 to vector<4x128xf32>
    %c0_12 = arith.constant 0 : index
    %c0_13 = arith.constant 0 : index
    %24 = vector.load %arg6[%c0_12, %c0_13] : memref<4x512xf32, #tpu.memory_space<vmem>>, vector<4x128xf32>
    tpu.vector_store %arg6[%c0_12, %c0_13], %23 {strides = array<i32>} : memref<4x512xf32, #tpu.memory_space<vmem>>, vector<4x128xf32>,
    %cst_14 = arith.constant 0.000000e+00 : f32
    %25 = vector.broadcast %cst_14 : f32 to vector<4x128xf32>
    %c0_15 = arith.constant 0 : index
    %c384 = arith.constant 384 : index
    %26 = vector.load %arg6[%c0_15, %c384] : memref<4x512xf32, #tpu.memory_space<vmem>>, vector<4x128xf32>
    tpu.vector_store %arg6[%c0_15, %c384], %25 {strides = array<i32>} : memref<4x512xf32, #tpu.memory_space<vmem>>, vector<4x128xf32>,
    %c0_16 = arith.constant 0 : index
    %c128 = arith.constant 128 : index
    %27 = vector.load %arg6[%c0_16, %c128] : memref<4x512xf32, #tpu.memory_space<vmem>>, vector<4x256xf32>
    tpu.vector_store %arg6[%c0_16, %c128], %1 {strides = array<i32>} : memref<4x512xf32, #tpu.memory_space<vmem>>, vector<4x256xf32>,
    %28 = tpu.iota {dimensions = array<i32: 1>} : vector<1x256xi32>
    %c16_i32 = arith.constant 16 : i32
    %c0_i32 = arith.constant 0 : i32
    %29 = arith.cmpi eq, %c16_i32, %c0_i32 : i32
    %c1_i32 = arith.constant 1 : i32
    %30 = arith.select %29, %c1_i32, %c16_i32 : i32
    %31 = vector.broadcast %30 : i32 to vector<1x256xi32>
    %32 = arith.remsi %28, %31 : vector<1x256xi32>
    %c0_i32_17 = arith.constant 0 : i32
    %33 = vector.broadcast %c0_i32_17 : i32 to vector<1x256xi32>
    %34 = arith.cmpi ne, %32, %33 : vector<1x256xi32>
    %c0_i32_18 = arith.constant 0 : i32
    %35 = vector.broadcast %c0_i32_18 : i32 to vector<1x256xi32>
    %36 = arith.cmpi slt, %32, %35 : vector<1x256xi32>
    %c0_i32_19 = arith.constant 0 : i32
    %37 = arith.cmpi slt, %30, %c0_i32_19 : i32
    %38 = vector.broadcast %37 : i1 to vector<1x256xi1>
    %39 = vector.broadcast %38 : vector<1x256xi1> to vector<1x256xi1>
    %40 = arith.xori %36, %39 : vector<1x256xi1>
    %41 = arith.andi %40, %34 : vector<1x256xi1>
    %42 = vector.broadcast %30 : i32 to vector<1x256xi32>
    %43 = arith.addi %32, %42 : vector<1x256xi32>
    %44 = arith.select %41, %43, %32 : vector<1x256xi1>, vector<1x256xi32>
    %c-3_i32 = arith.constant -3 : i32
    %45 = vector.broadcast %c-3_i32 : i32 to vector<1x256xi32>
    %46 = arith.addi %44, %45 : vector<1x256xi32>
    %c0_i32_20 = arith.constant 0 : i32
    %47 = vector.broadcast %c0_i32_20 : i32 to vector<1x256xi32>
    %48 = arith.cmpi sge, %46, %47 : vector<1x256xi32>
    %c-3_i32_21 = arith.constant -3 : i32
    %49 = vector.broadcast %c-3_i32_21 : i32 to vector<1x256xi32>
    %50 = arith.addi %44, %49 : vector<1x256xi32>
    %c16_i32_22 = arith.constant 16 : i32
    %51 = vector.broadcast %c16_i32_22 : i32 to vector<1x256xi32>
    %52 = arith.cmpi slt, %50, %51 : vector<1x256xi32>
    %53 = arith.andi %48, %52 : vector<1x256xi1>
    %54 = arith.extui %53 : vector<1x256xi1> to vector<1x256xi32>
    %55 = arith.sitofp %54 : vector<1x256xi32> to vector<1x256xf32>
    %c-2_i32 = arith.constant -2 : i32
    %56 = vector.broadcast %c-2_i32 : i32 to vector<1x256xi32>
    %57 = arith.addi %44, %56 : vector<1x256xi32>
    %c0_i32_23 = arith.constant 0 : i32
    %58 = vector.broadcast %c0_i32_23 : i32 to vector<1x256xi32>
    %59 = arith.cmpi sge, %57, %58 : vector<1x256xi32>
    %c-2_i32_24 = arith.constant -2 : i32
    %60 = vector.broadcast %c-2_i32_24 : i32 to vector<1x256xi32>
    %61 = arith.addi %44, %60 : vector<1x256xi32>
    %c16_i32_25 = arith.constant 16 : i32
    %62 = vector.broadcast %c16_i32_25 : i32 to vector<1x256xi32>
    %63 = arith.cmpi slt, %61, %62 : vector<1x256xi32>
    %64 = arith.andi %59, %63 : vector<1x256xi1>
    %65 = arith.extui %64 : vector<1x256xi1> to vector<1x256xi32>
    %66 = arith.sitofp %65 : vector<1x256xi32> to vector<1x256xf32>
    %c-1_i32 = arith.constant -1 : i32
    %67 = vector.broadcast %c-1_i32 : i32 to vector<1x256xi32>
    %68 = arith.addi %44, %67 : vector<1x256xi32>
    %c0_i32_26 = arith.constant 0 : i32
    %69 = vector.broadcast %c0_i32_26 : i32 to vector<1x256xi32>
    %70 = arith.cmpi sge, %68, %69 : vector<1x256xi32>
    %c-1_i32_27 = arith.constant -1 : i32
    %71 = vector.broadcast %c-1_i32_27 : i32 to vector<1x256xi32>
    %72 = arith.addi %44, %71 : vector<1x256xi32>
    %c16_i32_28 = arith.constant 16 : i32
    %73 = vector.broadcast %c16_i32_28 : i32 to vector<1x256xi32>
    %74 = arith.cmpi slt, %72, %73 : vector<1x256xi32>
    %75 = arith.andi %70, %74 : vector<1x256xi1>
    %76 = arith.extui %75 : vector<1x256xi1> to vector<1x256xi32>
    %77 = arith.sitofp %76 : vector<1x256xi32> to vector<1x256xf32>
    %c1_i32_29 = arith.constant 1 : i32
    %78 = vector.broadcast %c1_i32_29 : i32 to vector<1x256xi32>
    %79 = arith.addi %44, %78 : vector<1x256xi32>
    %c0_i32_30 = arith.constant 0 : i32
    %80 = vector.broadcast %c0_i32_30 : i32 to vector<1x256xi32>
    %81 = arith.cmpi sge, %79, %80 : vector<1x256xi32>
    %c1_i32_31 = arith.constant 1 : i32
    %82 = vector.broadcast %c1_i32_31 : i32 to vector<1x256xi32>
    %83 = arith.addi %44, %82 : vector<1x256xi32>
    %c16_i32_32 = arith.constant 16 : i32
    %84 = vector.broadcast %c16_i32_32 : i32 to vector<1x256xi32>
    %85 = arith.cmpi slt, %83, %84 : vector<1x256xi32>
    %86 = arith.andi %81, %85 : vector<1x256xi1>
    %87 = arith.extui %86 : vector<1x256xi1> to vector<1x256xi32>
    %88 = arith.sitofp %87 : vector<1x256xi32> to vector<1x256xf32>
    %c2_i32 = arith.constant 2 : i32
    %89 = vector.broadcast %c2_i32 : i32 to vector<1x256xi32>
    %90 = arith.addi %44, %89 : vector<1x256xi32>
    %c0_i32_33 = arith.constant 0 : i32
    %91 = vector.broadcast %c0_i32_33 : i32 to vector<1x256xi32>
    %92 = arith.cmpi sge, %90, %91 : vector<1x256xi32>
    %c2_i32_34 = arith.constant 2 : i32
    %93 = vector.broadcast %c2_i32_34 : i32 to vector<1x256xi32>
    %94 = arith.addi %44, %93 : vector<1x256xi32>
    %c16_i32_35 = arith.constant 16 : i32
    %95 = vector.broadcast %c16_i32_35 : i32 to vector<1x256xi32>
    %96 = arith.cmpi slt, %94, %95 : vector<1x256xi32>
    %97 = arith.andi %92, %96 : vector<1x256xi1>
    %98 = arith.extui %97 : vector<1x256xi1> to vector<1x256xi32>
    %99 = arith.sitofp %98 : vector<1x256xi32> to vector<1x256xf32>
    %c3_i32 = arith.constant 3 : i32
    %100 = vector.broadcast %c3_i32 : i32 to vector<1x256xi32>
    %101 = arith.addi %44, %100 : vector<1x256xi32>
    %c0_i32_36 = arith.constant 0 : i32
    %102 = vector.broadcast %c0_i32_36 : i32 to vector<1x256xi32>
    %103 = arith.cmpi sge, %101, %102 : vector<1x256xi32>
    %c3_i32_37 = arith.constant 3 : i32
    %104 = vector.broadcast %c3_i32_37 : i32 to vector<1x256xi32>
    %105 = arith.addi %44, %104 : vector<1x256xi32>
    %c16_i32_38 = arith.constant 16 : i32
    %106 = vector.broadcast %c16_i32_38 : i32 to vector<1x256xi32>
    %107 = arith.cmpi slt, %105, %106 : vector<1x256xi32>
    %108 = arith.andi %103, %107 : vector<1x256xi1>
    %109 = arith.extui %108 : vector<1x256xi1> to vector<1x256xi32>
    %110 = arith.sitofp %109 : vector<1x256xi32> to vector<1x256xf32>
    %c0_39 = arith.constant 0 : index
    %c0_40 = arith.constant 0 : index
    %111 = vector.load %arg4[%c0_39, %c0_40] : memref<4x49xf32, #tpu.memory_space<vmem>>, vector<4x49xf32>
    %cst_41 = arith.constant 0.000000e+00 : f32
    %112 = vector.broadcast %cst_41 : f32 to vector<4x256xf32>
    %c0_42 = arith.constant 0 : index
    %c77 = arith.constant 77 : index
    %113 = vector.load %arg6[%c0_42, %c77] : memref<4x512xf32, #tpu.memory_space<vmem>>, vector<4x256xf32>
    %114 = vector.broadcast %55 : vector<1x256xf32> to vector<4x256xf32>
    %115 = arith.mulf %113, %114 : vector<4x256xf32>
    %116 = vector.extract_strided_slice %111 {offsets = [0, 0], sizes = [4, 1], strides = [1, 1]} : vector<4x49xf32> to vector<4x1xf32>
    %117 = vector.broadcast %116 : vector<4x1xf32> to vector<4x256xf32>
    %118 = arith.mulf %117, %115 : vector<4x256xf32>
    %119 = arith.addf %112, %118 : vector<4x256xf32>
    %c0_43 = arith.constant 0 : index
    %c78 = arith.constant 78 : index
    %120 = vector.load %arg6[%c0_43, %c78] : memref<4x512xf32, #tpu.memory_space<vmem>>, vector<4x256xf32>
    %121 = vector.broadcast %66 : vector<1x256xf32> to vector<4x256xf32>
    %122 = arith.mulf %120, %121 : vector<4x256xf32>
    %123 = vector.extract_strided_slice %111 {offsets = [0, 1], sizes = [4, 1], strides = [1, 1]} : vector<4x49xf32> to vector<4x1xf32>
    %124 = vector.broadcast %123 : vector<4x1xf32> to vector<4x256xf32>
    %125 = arith.mulf %124, %122 : vector<4x256xf32>
    %126 = arith.addf %119, %125 : vector<4x256xf32>
    %c0_44 = arith.constant 0 : index
    %c79 = arith.constant 79 : index
    %127 = vector.load %arg6[%c0_44, %c79] : memref<4x512xf32, #tpu.memory_space<vmem>>, vector<4x256xf32>
    %128 = vector.broadcast %77 : vector<1x256xf32> to vector<4x256xf32>
    %129 = arith.mulf %127, %128 : vector<4x256xf32>
    %130 = vector.extract_strided_slice %111 {offsets = [0, 2], sizes = [4, 1], strides = [1, 1]} : vector<4x49xf32> to vector<4x1xf32>
    %131 = vector.broadcast %130 : vector<4x1xf32> to vector<4x256xf32>
    %132 = arith.mulf %131, %129 : vector<4x256xf32>
    %133 = arith.addf %126, %132 : vector<4x256xf32>
    %c0_45 = arith.constant 0 : index
    %c80 = arith.constant 80 : index
    %134 = vector.load %arg6[%c0_45, %c80] : memref<4x512xf32, #tpu.memory_space<vmem>>, vector<4x256xf32>
    %135 = vector.extract_strided_slice %111 {offsets = [0, 3], sizes = [4, 1], strides = [1, 1]} : vector<4x49xf32> to vector<4x1xf32>
    %136 = vector.broadcast %135 : vector<4x1xf32> to vector<4x256xf32>
    %137 = arith.mulf %136, %134 : vector<4x256xf32>
    %138 = arith.addf %133, %137 : vector<4x256xf32>
    %c0_46 = arith.constant 0 : index
    %c81 = arith.constant 81 : index
    %139 = vector.load %arg6[%c0_46, %c81] : memref<4x512xf32, #tpu.memory_space<vmem>>, vector<4x256xf32>
    %140 = vector.broadcast %88 : vector<1x256xf32> to vector<4x256xf32>
    %141 = arith.mulf %139, %140 : vector<4x256xf32>
    %142 = vector.extract_strided_slice %111 {offsets = [0, 4], sizes = [4, 1], strides = [1, 1]} : vector<4x49xf32> to vector<4x1xf32>
    %143 = vector.broadcast %142 : vector<4x1xf32> to vector<4x256xf32>
    %144 = arith.mulf %143, %141 : vector<4x256xf32>
    %145 = arith.addf %138, %144 : vector<4x256xf32>
    %c0_47 = arith.constant 0 : index
    %c82 = arith.constant 82 : index
    %146 = vector.load %arg6[%c0_47, %c82] : memref<4x512xf32, #tpu.memory_space<vmem>>, vector<4x256xf32>
    %147 = vector.broadcast %99 : vector<1x256xf32> to vector<4x256xf32>
    %148 = arith.mulf %146, %147 : vector<4x256xf32>
    %149 = vector.extract_strided_slice %111 {offsets = [0, 5], sizes = [4, 1], strides = [1, 1]} : vector<4x49xf32> to vector<4x1xf32>
    %150 = vector.broadcast %149 : vector<4x1xf32> to vector<4x256xf32>
    %151 = arith.mulf %150, %148 : vector<4x256xf32>
    %152 = arith.addf %145, %151 : vector<4x256xf32>
    %c0_48 = arith.constant 0 : index
    %c83 = arith.constant 83 : index
    %153 = vector.load %arg6[%c0_48, %c83] : memref<4x512xf32, #tpu.memory_space<vmem>>, vector<4x256xf32>
    %154 = vector.broadcast %110 : vector<1x256xf32> to vector<4x256xf32>
    %155 = arith.mulf %153, %154 : vector<4x256xf32>
    %156 = vector.extract_strided_slice %111 {offsets = [0, 6], sizes = [4, 1], strides = [1, 1]} : vector<4x49xf32> to vector<4x1xf32>
    %157 = vector.broadcast %156 : vector<4x1xf32> to vector<4x256xf32>
    %158 = arith.mulf %157, %155 : vector<4x256xf32>
    %159 = arith.addf %152, %158 : vector<4x256xf32>
    %c0_49 = arith.constant 0 : index
    %c93 = arith.constant 93 : index
    %160 = vector.load %arg6[%c0_49, %c93] : memref<4x512xf32, #tpu.memory_space<vmem>>, vector<4x256xf32>
    %161 = vector.broadcast %55 : vector<1x256xf32> to vector<4x256xf32>
    %162 = arith.mulf %160, %161 : vector<4x256xf32>
    %163 = vector.extract_strided_slice %111 {offsets = [0, 7], sizes = [4, 1], strides = [1, 1]} : vector<4x49xf32> to vector<4x1xf32>
    %164 = vector.broadcast %163 : vector<4x1xf32> to vector<4x256xf32>
    %165 = arith.mulf %164, %162 : vector<4x256xf32>
    %166 = arith.addf %159, %165 : vector<4x256xf32>
    %c0_50 = arith.constant 0 : index
    %c94 = arith.constant 94 : index
    %167 = vector.load %arg6[%c0_50, %c94] : memref<4x512xf32, #tpu.memory_space<vmem>>, vector<4x256xf32>
    %168 = vector.broadcast %66 : vector<1x256xf32> to vector<4x256xf32>
    %169 = arith.mulf %167, %168 : vector<4x256xf32>
    %170 = vector.extract_strided_slice %111 {offsets = [0, 8], sizes = [4, 1], strides = [1, 1]} : vector<4x49xf32> to vector<4x1xf32>
    %171 = vector.broadcast %170 : vector<4x1xf32> to vector<4x256xf32>
    %172 = arith.mulf %171, %169 : vector<4x256xf32>
    %173 = arith.addf %166, %172 : vector<4x256xf32>
    %c0_51 = arith.constant 0 : index
    %c95 = arith.constant 95 : index
    %174 = vector.load %arg6[%c0_51, %c95] : memref<4x512xf32, #tpu.memory_space<vmem>>, vector<4x256xf32>
    %175 = vector.broadcast %77 : vector<1x256xf32> to vector<4x256xf32>
    %176 = arith.mulf %174, %175 : vector<4x256xf32>
    %177 = vector.extract_strided_slice %111 {offsets = [0, 9], sizes = [4, 1], strides = [1, 1]} : vector<4x49xf32> to vector<4x1xf32>
    %178 = vector.broadcast %177 : vector<4x1xf32> to vector<4x256xf32>
    %179 = arith.mulf %178, %176 : vector<4x256xf32>
    %180 = arith.addf %173, %179 : vector<4x256xf32>
    %c0_52 = arith.constant 0 : index
    %c96 = arith.constant 96 : index
    %181 = vector.load %arg6[%c0_52, %c96] : memref<4x512xf32, #tpu.memory_space<vmem>>, vector<4x256xf32>
    %182 = vector.extract_strided_slice %111 {offsets = [0, 10], sizes = [4, 1], strides = [1, 1]} : vector<4x49xf32> to vector<4x1xf32>
    %183 = vector.broadcast %182 : vector<4x1xf32> to vector<4x256xf32>
    %184 = arith.mulf %183, %181 : vector<4x256xf32>
    %185 = arith.addf %180, %184 : vector<4x256xf32>
    %c0_53 = arith.constant 0 : index
    %c97 = arith.constant 97 : index
    %186 = vector.load %arg6[%c0_53, %c97] : memref<4x512xf32, #tpu.memory_space<vmem>>, vector<4x256xf32>
    %187 = vector.broadcast %88 : vector<1x256xf32> to vector<4x256xf32>
    %188 = arith.mulf %186, %187 : vector<4x256xf32>
    %189 = vector.extract_strided_slice %111 {offsets = [0, 11], sizes = [4, 1], strides = [1, 1]} : vector<4x49xf32> to vector<4x1xf32>
    %190 = vector.broadcast %189 : vector<4x1xf32> to vector<4x256xf32>
    %191 = arith.mulf %190, %188 : vector<4x256xf32>
    %192 = arith.addf %185, %191 : vector<4x256xf32>
    %c0_54 = arith.constant 0 : index
    %c98 = arith.constant 98 : index
    %193 = vector.load %arg6[%c0_54, %c98] : memref<4x512xf32, #tpu.memory_space<vmem>>, vector<4x256xf32>
    %194 = vector.broadcast %99 : vector<1x256xf32> to vector<4x256xf32>
    %195 = arith.mulf %193, %194 : vector<4x256xf32>
    %196 = vector.extract_strided_slice %111 {offsets = [0, 12], sizes = [4, 1], strides = [1, 1]} : vector<4x49xf32> to vector<4x1xf32>
    %197 = vector.broadcast %196 : vector<4x1xf32> to vector<4x256xf32>
    %198 = arith.mulf %197, %195 : vector<4x256xf32>
    %199 = arith.addf %192, %198 : vector<4x256xf32>
    %c0_55 = arith.constant 0 : index
    %c99 = arith.constant 99 : index
    %200 = vector.load %arg6[%c0_55, %c99] : memref<4x512xf32, #tpu.memory_space<vmem>>, vector<4x256xf32>
    %201 = vector.broadcast %110 : vector<1x256xf32> to vector<4x256xf32>
    %202 = arith.mulf %200, %201 : vector<4x256xf32>
    %203 = vector.extract_strided_slice %111 {offsets = [0, 13], sizes = [4, 1], strides = [1, 1]} : vector<4x49xf32> to vector<4x1xf32>
    %204 = vector.broadcast %203 : vector<4x1xf32> to vector<4x256xf32>
    %205 = arith.mulf %204, %202 : vector<4x256xf32>
    %206 = arith.addf %199, %205 : vector<4x256xf32>
    %c0_56 = arith.constant 0 : index
    %c109 = arith.constant 109 : index
    %207 = vector.load %arg6[%c0_56, %c109] : memref<4x512xf32, #tpu.memory_space<vmem>>, vector<4x256xf32>
    %208 = vector.broadcast %55 : vector<1x256xf32> to vector<4x256xf32>
    %209 = arith.mulf %207, %208 : vector<4x256xf32>
    %210 = vector.extract_strided_slice %111 {offsets = [0, 14], sizes = [4, 1], strides = [1, 1]} : vector<4x49xf32> to vector<4x1xf32>
    %211 = vector.broadcast %210 : vector<4x1xf32> to vector<4x256xf32>
    %212 = arith.mulf %211, %209 : vector<4x256xf32>
    %213 = arith.addf %206, %212 : vector<4x256xf32>
    %c0_57 = arith.constant 0 : index
    %c110 = arith.constant 110 : index
    %214 = vector.load %arg6[%c0_57, %c110] : memref<4x512xf32, #tpu.memory_space<vmem>>, vector<4x256xf32>
    %215 = vector.broadcast %66 : vector<1x256xf32> to vector<4x256xf32>
    %216 = arith.mulf %214, %215 : vector<4x256xf32>
    %217 = vector.extract_strided_slice %111 {offsets = [0, 15], sizes = [4, 1], strides = [1, 1]} : vector<4x49xf32> to vector<4x1xf32>
    %218 = vector.broadcast %217 : vector<4x1xf32> to vector<4x256xf32>
    %219 = arith.mulf %218, %216 : vector<4x256xf32>
    %220 = arith.addf %213, %219 : vector<4x256xf32>
    %c0_58 = arith.constant 0 : index
    %c111 = arith.constant 111 : index
    %221 = vector.load %arg6[%c0_58, %c111] : memref<4x512xf32, #tpu.memory_space<vmem>>, vector<4x256xf32>
    %222 = vector.broadcast %77 : vector<1x256xf32> to vector<4x256xf32>
    %223 = arith.mulf %221, %222 : vector<4x256xf32>
    %224 = vector.extract_strided_slice %111 {offsets = [0, 16], sizes = [4, 1], strides = [1, 1]} : vector<4x49xf32> to vector<4x1xf32>
    %225 = vector.broadcast %224 : vector<4x1xf32> to vector<4x256xf32>
    %226 = arith.mulf %225, %223 : vector<4x256xf32>
    %227 = arith.addf %220, %226 : vector<4x256xf32>
    %c0_59 = arith.constant 0 : index
    %c112 = arith.constant 112 : index
    %228 = vector.load %arg6[%c0_59, %c112] : memref<4x512xf32, #tpu.memory_space<vmem>>, vector<4x256xf32>
    %229 = vector.extract_strided_slice %111 {offsets = [0, 17], sizes = [4, 1], strides = [1, 1]} : vector<4x49xf32> to vector<4x1xf32>
    %230 = vector.broadcast %229 : vector<4x1xf32> to vector<4x256xf32>
    %231 = arith.mulf %230, %228 : vector<4x256xf32>
    %232 = arith.addf %227, %231 : vector<4x256xf32>
    %c0_60 = arith.constant 0 : index
    %c113 = arith.constant 113 : index
    %233 = vector.load %arg6[%c0_60, %c113] : memref<4x512xf32, #tpu.memory_space<vmem>>, vector<4x256xf32>
    %234 = vector.broadcast %88 : vector<1x256xf32> to vector<4x256xf32>
    %235 = arith.mulf %233, %234 : vector<4x256xf32>
    %236 = vector.extract_strided_slice %111 {offsets = [0, 18], sizes = [4, 1], strides = [1, 1]} : vector<4x49xf32> to vector<4x1xf32>
    %237 = vector.broadcast %236 : vector<4x1xf32> to vector<4x256xf32>
    %238 = arith.mulf %237, %235 : vector<4x256xf32>
    %239 = arith.addf %232, %238 : vector<4x256xf32>
    %c0_61 = arith.constant 0 : index
    %c114 = arith.constant 114 : index
    %240 = vector.load %arg6[%c0_61, %c114] : memref<4x512xf32, #tpu.memory_space<vmem>>, vector<4x256xf32>
    %241 = vector.broadcast %99 : vector<1x256xf32> to vector<4x256xf32>
    %242 = arith.mulf %240, %241 : vector<4x256xf32>
    %243 = vector.extract_strided_slice %111 {offsets = [0, 19], sizes = [4, 1], strides = [1, 1]} : vector<4x49xf32> to vector<4x1xf32>
    %244 = vector.broadcast %243 : vector<4x1xf32> to vector<4x256xf32>
    %245 = arith.mulf %244, %242 : vector<4x256xf32>
    %246 = arith.addf %239, %245 : vector<4x256xf32>
    %c0_62 = arith.constant 0 : index
    %c115 = arith.constant 115 : index
    %247 = vector.load %arg6[%c0_62, %c115] : memref<4x512xf32, #tpu.memory_space<vmem>>, vector<4x256xf32>
    %248 = vector.broadcast %110 : vector<1x256xf32> to vector<4x256xf32>
    %249 = arith.mulf %247, %248 : vector<4x256xf32>
    %250 = vector.extract_strided_slice %111 {offsets = [0, 20], sizes = [4, 1], strides = [1, 1]} : vector<4x49xf32> to vector<4x1xf32>
    %251 = vector.broadcast %250 : vector<4x1xf32> to vector<4x256xf32>
    %252 = arith.mulf %251, %249 : vector<4x256xf32>
    %253 = arith.addf %246, %252 : vector<4x256xf32>
    %c0_63 = arith.constant 0 : index
    %c125 = arith.constant 125 : index
    %254 = vector.load %arg6[%c0_63, %c125] : memref<4x512xf32, #tpu.memory_space<vmem>>, vector<4x256xf32>
    %255 = vector.broadcast %55 : vector<1x256xf32> to vector<4x256xf32>
    %256 = arith.mulf %254, %255 : vector<4x256xf32>
    %257 = vector.extract_strided_slice %111 {offsets = [0, 21], sizes = [4, 1], strides = [1, 1]} : vector<4x49xf32> to vector<4x1xf32>
    %258 = vector.broadcast %257 : vector<4x1xf32> to vector<4x256xf32>
    %259 = arith.mulf %258, %256 : vector<4x256xf32>
    %260 = arith.addf %253, %259 : vector<4x256xf32>
    %c0_64 = arith.constant 0 : index
    %c126 = arith.constant 126 : index
    %261 = vector.load %arg6[%c0_64, %c126] : memref<4x512xf32, #tpu.memory_space<vmem>>, vector<4x256xf32>
    %262 = vector.broadcast %66 : vector<1x256xf32> to vector<4x256xf32>
    %263 = arith.mulf %261, %262 : vector<4x256xf32>
    %264 = vector.extract_strided_slice %111 {offsets = [0, 22], sizes = [4, 1], strides = [1, 1]} : vector<4x49xf32> to vector<4x1xf32>
    %265 = vector.broadcast %264 : vector<4x1xf32> to vector<4x256xf32>
    %266 = arith.mulf %265, %263 : vector<4x256xf32>
    %267 = arith.addf %260, %266 : vector<4x256xf32>
    %c0_65 = arith.constant 0 : index
    %c127 = arith.constant 127 : index
    %268 = vector.load %arg6[%c0_65, %c127] : memref<4x512xf32, #tpu.memory_space<vmem>>, vector<4x256xf32>
    %269 = vector.broadcast %77 : vector<1x256xf32> to vector<4x256xf32>
    %270 = arith.mulf %268, %269 : vector<4x256xf32>
    %271 = vector.extract_strided_slice %111 {offsets = [0, 23], sizes = [4, 1], strides = [1, 1]} : vector<4x49xf32> to vector<4x1xf32>
    %272 = vector.broadcast %271 : vector<4x1xf32> to vector<4x256xf32>
    %273 = arith.mulf %272, %270 : vector<4x256xf32>
    %274 = arith.addf %267, %273 : vector<4x256xf32>
    %c0_66 = arith.constant 0 : index
    %c128_67 = arith.constant 128 : index
    %275 = vector.load %arg6[%c0_66, %c128_67] : memref<4x512xf32, #tpu.memory_space<vmem>>, vector<4x256xf32>
    %276 = vector.extract_strided_slice %111 {offsets = [0, 24], sizes = [4, 1], strides = [1, 1]} : vector<4x49xf32> to vector<4x1xf32>
    %277 = vector.broadcast %276 : vector<4x1xf32> to vector<4x256xf32>
    %278 = arith.mulf %277, %275 : vector<4x256xf32>
    %279 = arith.addf %274, %278 : vector<4x256xf32>
    %c0_68 = arith.constant 0 : index
    %c129 = arith.constant 129 : index
    %280 = vector.load %arg6[%c0_68, %c129] : memref<4x512xf32, #tpu.memory_space<vmem>>, vector<4x256xf32>
    %281 = vector.broadcast %88 : vector<1x256xf32> to vector<4x256xf32>
    %282 = arith.mulf %280, %281 : vector<4x256xf32>
    %283 = vector.extract_strided_slice %111 {offsets = [0, 25], sizes = [4, 1], strides = [1, 1]} : vector<4x49xf32> to vector<4x1xf32>
    %284 = vector.broadcast %283 : vector<4x1xf32> to vector<4x256xf32>
    %285 = arith.mulf %284, %282 : vector<4x256xf32>
    %286 = arith.addf %279, %285 : vector<4x256xf32>
    %c0_69 = arith.constant 0 : index
    %c130 = arith.constant 130 : index
    %287 = vector.load %arg6[%c0_69, %c130] : memref<4x512xf32, #tpu.memory_space<vmem>>, vector<4x256xf32>
    %288 = vector.broadcast %99 : vector<1x256xf32> to vector<4x256xf32>
    %289 = arith.mulf %287, %288 : vector<4x256xf32>
    %290 = vector.extract_strided_slice %111 {offsets = [0, 26], sizes = [4, 1], strides = [1, 1]} : vector<4x49xf32> to vector<4x1xf32>
    %291 = vector.broadcast %290 : vector<4x1xf32> to vector<4x256xf32>
    %292 = arith.mulf %291, %289 : vector<4x256xf32>
    %293 = arith.addf %286, %292 : vector<4x256xf32>
    %c0_70 = arith.constant 0 : index
    %c131 = arith.constant 131 : index
    %294 = vector.load %arg6[%c0_70, %c131] : memref<4x512xf32, #tpu.memory_space<vmem>>, vector<4x256xf32>
    %295 = vector.broadcast %110 : vector<1x256xf32> to vector<4x256xf32>
    %296 = arith.mulf %294, %295 : vector<4x256xf32>
    %297 = vector.extract_strided_slice %111 {offsets = [0, 27], sizes = [4, 1], strides = [1, 1]} : vector<4x49xf32> to vector<4x1xf32>
    %298 = vector.broadcast %297 : vector<4x1xf32> to vector<4x256xf32>
    %299 = arith.mulf %298, %296 : vector<4x256xf32>
    %300 = arith.addf %293, %299 : vector<4x256xf32>
    %c0_71 = arith.constant 0 : index
    %c141 = arith.constant 141 : index
    %301 = vector.load %arg6[%c0_71, %c141] : memref<4x512xf32, #tpu.memory_space<vmem>>, vector<4x256xf32>
    %302 = vector.broadcast %55 : vector<1x256xf32> to vector<4x256xf32>
    %303 = arith.mulf %301, %302 : vector<4x256xf32>
    %304 = vector.extract_strided_slice %111 {offsets = [0, 28], sizes = [4, 1], strides = [1, 1]} : vector<4x49xf32> to vector<4x1xf32>
    %305 = vector.broadcast %304 : vector<4x1xf32> to vector<4x256xf32>
    %306 = arith.mulf %305, %303 : vector<4x256xf32>
    %307 = arith.addf %300, %306 : vector<4x256xf32>
    %c0_72 = arith.constant 0 : index
    %c142 = arith.constant 142 : index
    %308 = vector.load %arg6[%c0_72, %c142] : memref<4x512xf32, #tpu.memory_space<vmem>>, vector<4x256xf32>
    %309 = vector.broadcast %66 : vector<1x256xf32> to vector<4x256xf32>
    %310 = arith.mulf %308, %309 : vector<4x256xf32>
    %311 = vector.extract_strided_slice %111 {offsets = [0, 29], sizes = [4, 1], strides = [1, 1]} : vector<4x49xf32> to vector<4x1xf32>
    %312 = vector.broadcast %311 : vector<4x1xf32> to vector<4x256xf32>
    %313 = arith.mulf %312, %310 : vector<4x256xf32>
    %314 = arith.addf %307, %313 : vector<4x256xf32>
    %c0_73 = arith.constant 0 : index
    %c143 = arith.constant 143 : index
    %315 = vector.load %arg6[%c0_73, %c143] : memref<4x512xf32, #tpu.memory_space<vmem>>, vector<4x256xf32>
    %316 = vector.broadcast %77 : vector<1x256xf32> to vector<4x256xf32>
    %317 = arith.mulf %315, %316 : vector<4x256xf32>
    %318 = vector.extract_strided_slice %111 {offsets = [0, 30], sizes = [4, 1], strides = [1, 1]} : vector<4x49xf32> to vector<4x1xf32>
    %319 = vector.broadcast %318 : vector<4x1xf32> to vector<4x256xf32>
    %320 = arith.mulf %319, %317 : vector<4x256xf32>
    %321 = arith.addf %314, %320 : vector<4x256xf32>
    %c0_74 = arith.constant 0 : index
    %c144 = arith.constant 144 : index
    %322 = vector.load %arg6[%c0_74, %c144] : memref<4x512xf32, #tpu.memory_space<vmem>>, vector<4x256xf32>
    %323 = vector.extract_strided_slice %111 {offsets = [0, 31], sizes = [4, 1], strides = [1, 1]} : vector<4x49xf32> to vector<4x1xf32>
    %324 = vector.broadcast %323 : vector<4x1xf32> to vector<4x256xf32>
    %325 = arith.mulf %324, %322 : vector<4x256xf32>
    %326 = arith.addf %321, %325 : vector<4x256xf32>
    %c0_75 = arith.constant 0 : index
    %c145 = arith.constant 145 : index
    %327 = vector.load %arg6[%c0_75, %c145] : memref<4x512xf32, #tpu.memory_space<vmem>>, vector<4x256xf32>
    %328 = vector.broadcast %88 : vector<1x256xf32> to vector<4x256xf32>
    %329 = arith.mulf %327, %328 : vector<4x256xf32>
    %330 = vector.extract_strided_slice %111 {offsets = [0, 32], sizes = [4, 1], strides = [1, 1]} : vector<4x49xf32> to vector<4x1xf32>
    %331 = vector.broadcast %330 : vector<4x1xf32> to vector<4x256xf32>
    %332 = arith.mulf %331, %329 : vector<4x256xf32>
    %333 = arith.addf %326, %332 : vector<4x256xf32>
    %c0_76 = arith.constant 0 : index
    %c146 = arith.constant 146 : index
    %334 = vector.load %arg6[%c0_76, %c146] : memref<4x512xf32, #tpu.memory_space<vmem>>, vector<4x256xf32>
    %335 = vector.broadcast %99 : vector<1x256xf32> to vector<4x256xf32>
    %336 = arith.mulf %334, %335 : vector<4x256xf32>
    %337 = vector.extract_strided_slice %111 {offsets = [0, 33], sizes = [4, 1], strides = [1, 1]} : vector<4x49xf32> to vector<4x1xf32>
    %338 = vector.broadcast %337 : vector<4x1xf32> to vector<4x256xf32>
    %339 = arith.mulf %338, %336 : vector<4x256xf32>
    %340 = arith.addf %333, %339 : vector<4x256xf32>
    %c0_77 = arith.constant 0 : index
    %c147 = arith.constant 147 : index
    %341 = vector.load %arg6[%c0_77, %c147] : memref<4x512xf32, #tpu.memory_space<vmem>>, vector<4x256xf32>
    %342 = vector.broadcast %110 : vector<1x256xf32> to vector<4x256xf32>
    %343 = arith.mulf %341, %342 : vector<4x256xf32>
    %344 = vector.extract_strided_slice %111 {offsets = [0, 34], sizes = [4, 1], strides = [1, 1]} : vector<4x49xf32> to vector<4x1xf32>
    %345 = vector.broadcast %344 : vector<4x1xf32> to vector<4x256xf32>
    %346 = arith.mulf %345, %343 : vector<4x256xf32>
    %347 = arith.addf %340, %346 : vector<4x256xf32>
    %c0_78 = arith.constant 0 : index
    %c157 = arith.constant 157 : index
    %348 = vector.load %arg6[%c0_78, %c157] : memref<4x512xf32, #tpu.memory_space<vmem>>, vector<4x256xf32>
    %349 = vector.broadcast %55 : vector<1x256xf32> to vector<4x256xf32>
    %350 = arith.mulf %348, %349 : vector<4x256xf32>
    %351 = vector.extract_strided_slice %111 {offsets = [0, 35], sizes = [4, 1], strides = [1, 1]} : vector<4x49xf32> to vector<4x1xf32>
    %352 = vector.broadcast %351 : vector<4x1xf32> to vector<4x256xf32>
    %353 = arith.mulf %352, %350 : vector<4x256xf32>
    %354 = arith.addf %347, %353 : vector<4x256xf32>
    %c0_79 = arith.constant 0 : index
    %c158 = arith.constant 158 : index
    %355 = vector.load %arg6[%c0_79, %c158] : memref<4x512xf32, #tpu.memory_space<vmem>>, vector<4x256xf32>
    %356 = vector.broadcast %66 : vector<1x256xf32> to vector<4x256xf32>
    %357 = arith.mulf %355, %356 : vector<4x256xf32>
    %358 = vector.extract_strided_slice %111 {offsets = [0, 36], sizes = [4, 1], strides = [1, 1]} : vector<4x49xf32> to vector<4x1xf32>
    %359 = vector.broadcast %358 : vector<4x1xf32> to vector<4x256xf32>
    %360 = arith.mulf %359, %357 : vector<4x256xf32>
    %361 = arith.addf %354, %360 : vector<4x256xf32>
    %c0_80 = arith.constant 0 : index
    %c159 = arith.constant 159 : index
    %362 = vector.load %arg6[%c0_80, %c159] : memref<4x512xf32, #tpu.memory_space<vmem>>, vector<4x256xf32>
    %363 = vector.broadcast %77 : vector<1x256xf32> to vector<4x256xf32>
    %364 = arith.mulf %362, %363 : vector<4x256xf32>
    %365 = vector.extract_strided_slice %111 {offsets = [0, 37], sizes = [4, 1], strides = [1, 1]} : vector<4x49xf32> to vector<4x1xf32>
    %366 = vector.broadcast %365 : vector<4x1xf32> to vector<4x256xf32>
    %367 = arith.mulf %366, %364 : vector<4x256xf32>
    %368 = arith.addf %361, %367 : vector<4x256xf32>
    %c0_81 = arith.constant 0 : index
    %c160 = arith.constant 160 : index
    %369 = vector.load %arg6[%c0_81, %c160] : memref<4x512xf32, #tpu.memory_space<vmem>>, vector<4x256xf32>
    %370 = vector.extract_strided_slice %111 {offsets = [0, 38], sizes = [4, 1], strides = [1, 1]} : vector<4x49xf32> to vector<4x1xf32>
    %371 = vector.broadcast %370 : vector<4x1xf32> to vector<4x256xf32>
    %372 = arith.mulf %371, %369 : vector<4x256xf32>
    %373 = arith.addf %368, %372 : vector<4x256xf32>
    %c0_82 = arith.constant 0 : index
    %c161 = arith.constant 161 : index
    %374 = vector.load %arg6[%c0_82, %c161] : memref<4x512xf32, #tpu.memory_space<vmem>>, vector<4x256xf32>
    %375 = vector.broadcast %88 : vector<1x256xf32> to vector<4x256xf32>
    %376 = arith.mulf %374, %375 : vector<4x256xf32>
    %377 = vector.extract_strided_slice %111 {offsets = [0, 39], sizes = [4, 1], strides = [1, 1]} : vector<4x49xf32> to vector<4x1xf32>
    %378 = vector.broadcast %377 : vector<4x1xf32> to vector<4x256xf32>
    %379 = arith.mulf %378, %376 : vector<4x256xf32>
    %380 = arith.addf %373, %379 : vector<4x256xf32>
    %c0_83 = arith.constant 0 : index
    %c162 = arith.constant 162 : index
    %381 = vector.load %arg6[%c0_83, %c162] : memref<4x512xf32, #tpu.memory_space<vmem>>, vector<4x256xf32>
    %382 = vector.broadcast %99 : vector<1x256xf32> to vector<4x256xf32>
    %383 = arith.mulf %381, %382 : vector<4x256xf32>
    %384 = vector.extract_strided_slice %111 {offsets = [0, 40], sizes = [4, 1], strides = [1, 1]} : vector<4x49xf32> to vector<4x1xf32>
    %385 = vector.broadcast %384 : vector<4x1xf32> to vector<4x256xf32>
    %386 = arith.mulf %385, %383 : vector<4x256xf32>
    %387 = arith.addf %380, %386 : vector<4x256xf32>
    %c0_84 = arith.constant 0 : index
    %c163 = arith.constant 163 : index
    %388 = vector.load %arg6[%c0_84, %c163] : memref<4x512xf32, #tpu.memory_space<vmem>>, vector<4x256xf32>
    %389 = vector.broadcast %110 : vector<1x256xf32> to vector<4x256xf32>
    %390 = arith.mulf %388, %389 : vector<4x256xf32>
    %391 = vector.extract_strided_slice %111 {offsets = [0, 41], sizes = [4, 1], strides = [1, 1]} : vector<4x49xf32> to vector<4x1xf32>
    %392 = vector.broadcast %391 : vector<4x1xf32> to vector<4x256xf32>
    %393 = arith.mulf %392, %390 : vector<4x256xf32>
    %394 = arith.addf %387, %393 : vector<4x256xf32>
    %c0_85 = arith.constant 0 : index
    %c173 = arith.constant 173 : index
    %395 = vector.load %arg6[%c0_85, %c173] : memref<4x512xf32, #tpu.memory_space<vmem>>, vector<4x256xf32>
    %396 = vector.broadcast %55 : vector<1x256xf32> to vector<4x256xf32>
    %397 = arith.mulf %395, %396 : vector<4x256xf32>
    %398 = vector.extract_strided_slice %111 {offsets = [0, 42], sizes = [4, 1], strides = [1, 1]} : vector<4x49xf32> to vector<4x1xf32>
    %399 = vector.broadcast %398 : vector<4x1xf32> to vector<4x256xf32>
    %400 = arith.mulf %399, %397 : vector<4x256xf32>
    %401 = arith.addf %394, %400 : vector<4x256xf32>
    %c0_86 = arith.constant 0 : index
    %c174 = arith.constant 174 : index
    %402 = vector.load %arg6[%c0_86, %c174] : memref<4x512xf32, #tpu.memory_space<vmem>>, vector<4x256xf32>
    %403 = vector.broadcast %66 : vector<1x256xf32> to vector<4x256xf32>
    %404 = arith.mulf %402, %403 : vector<4x256xf32>
    %405 = vector.extract_strided_slice %111 {offsets = [0, 43], sizes = [4, 1], strides = [1, 1]} : vector<4x49xf32> to vector<4x1xf32>
    %406 = vector.broadcast %405 : vector<4x1xf32> to vector<4x256xf32>
    %407 = arith.mulf %406, %404 : vector<4x256xf32>
    %408 = arith.addf %401, %407 : vector<4x256xf32>
    %c0_87 = arith.constant 0 : index
    %c175 = arith.constant 175 : index
    %409 = vector.load %arg6[%c0_87, %c175] : memref<4x512xf32, #tpu.memory_space<vmem>>, vector<4x256xf32>
    %410 = vector.broadcast %77 : vector<1x256xf32> to vector<4x256xf32>
    %411 = arith.mulf %409, %410 : vector<4x256xf32>
    %412 = vector.extract_strided_slice %111 {offsets = [0, 44], sizes = [4, 1], strides = [1, 1]} : vector<4x49xf32> to vector<4x1xf32>
    %413 = vector.broadcast %412 : vector<4x1xf32> to vector<4x256xf32>
    %414 = arith.mulf %413, %411 : vector<4x256xf32>
    %415 = arith.addf %408, %414 : vector<4x256xf32>
    %c0_88 = arith.constant 0 : index
    %c176 = arith.constant 176 : index
    %416 = vector.load %arg6[%c0_88, %c176] : memref<4x512xf32, #tpu.memory_space<vmem>>, vector<4x256xf32>
    %417 = vector.extract_strided_slice %111 {offsets = [0, 45], sizes = [4, 1], strides = [1, 1]} : vector<4x49xf32> to vector<4x1xf32>
    %418 = vector.broadcast %417 : vector<4x1xf32> to vector<4x256xf32>
    %419 = arith.mulf %418, %416 : vector<4x256xf32>
    %420 = arith.addf %415, %419 : vector<4x256xf32>
    %c0_89 = arith.constant 0 : index
    %c177 = arith.constant 177 : index
    %421 = vector.load %arg6[%c0_89, %c177] : memref<4x512xf32, #tpu.memory_space<vmem>>, vector<4x256xf32>
    %422 = vector.broadcast %88 : vector<1x256xf32> to vector<4x256xf32>
    %423 = arith.mulf %421, %422 : vector<4x256xf32>
    %424 = vector.extract_strided_slice %111 {offsets = [0, 46], sizes = [4, 1], strides = [1, 1]} : vector<4x49xf32> to vector<4x1xf32>
    %425 = vector.broadcast %424 : vector<4x1xf32> to vector<4x256xf32>
    %426 = arith.mulf %425, %423 : vector<4x256xf32>
    %427 = arith.addf %420, %426 : vector<4x256xf32>
    %c0_90 = arith.constant 0 : index
    %c178 = arith.constant 178 : index
    %428 = vector.load %arg6[%c0_90, %c178] : memref<4x512xf32, #tpu.memory_space<vmem>>, vector<4x256xf32>
    %429 = vector.broadcast %99 : vector<1x256xf32> to vector<4x256xf32>
    %430 = arith.mulf %428, %429 : vector<4x256xf32>
    %431 = vector.extract_strided_slice %111 {offsets = [0, 47], sizes = [4, 1], strides = [1, 1]} : vector<4x49xf32> to vector<4x1xf32>
    %432 = vector.broadcast %431 : vector<4x1xf32> to vector<4x256xf32>
    %433 = arith.mulf %432, %430 : vector<4x256xf32>
    %434 = arith.addf %427, %433 : vector<4x256xf32>
    %c0_91 = arith.constant 0 : index
    %c179 = arith.constant 179 : index
    %435 = vector.load %arg6[%c0_91, %c179] : memref<4x512xf32, #tpu.memory_space<vmem>>, vector<4x256xf32>
    %436 = vector.broadcast %110 : vector<1x256xf32> to vector<4x256xf32>
    %437 = arith.mulf %435, %436 : vector<4x256xf32>
    %438 = vector.extract_strided_slice %111 {offsets = [0, 48], sizes = [4, 1], strides = [1, 1]} : vector<4x49xf32> to vector<4x1xf32>
    %439 = vector.broadcast %438 : vector<4x1xf32> to vector<4x256xf32>
    %440 = arith.mulf %439, %437 : vector<4x256xf32>
    %441 = arith.addf %434, %440 : vector<4x256xf32>
    %cst_92 = arith.constant dense<0.000000e+00> : vector<256xf32>
    %442 = vector.multi_reduction <add>, %441, %cst_92 [0] : vector<4x256xf32> to vector<256xf32>
    %443 = vector.shape_cast %442 : vector<256xf32> to vector<1x256xf32>
    %444 = arith.negf %443 : vector<1x256xf32>
    %445 = math.exp %444 : vector<1x256xf32>
    %cst_93 = arith.constant 1.000000e+00 : f32
    %446 = vector.broadcast %cst_93 : f32 to vector<1x256xf32>
    %447 = arith.addf %446, %445 : vector<1x256xf32>
    %448 = arith.divf %446, %447 : vector<1x256xf32>
    %449 = vector.broadcast %22 : vector<4x1xf32> to vector<4x256xf32>
    %450 = vector.broadcast %448 : vector<1x256xf32> to vector<4x256xf32>
    %451 = arith.addf %449, %450 : vector<4x256xf32>
    %452 = arith.mulf %1, %451 : vector<4x256xf32>
    %c0_94 = arith.constant 0 : index
    %c0_95 = arith.constant 0 : index
    %c0_96 = arith.constant 0 : index
    %453 = vector.load %arg5[%c0_94, %c0_95, %c0_96] : memref<1x4x256xf32, #tpu.memory_space<vmem>>, vector<1x4x256xf32>
    %454 = vector.shape_cast %453 : vector<1x4x256xf32> to vector<4x256xf32>
    %455 = vector.shape_cast %452 : vector<4x256xf32> to vector<1x4x256xf32>
    tpu.vector_store %arg5[%c0_94, %c0_95, %c0_96], %455 {strides = array<i32>} : memref<1x4x256xf32, #tpu.memory_space<vmem>>, vector<1x4x256xf32>,
    return
  }
  func.func @transform_0(%arg0: i32) -> (i32, i32, i32) {
    %c0_i32 = arith.constant 0 : i32
    %c0_i32_0 = arith.constant 0 : i32
    %c0_i32_1 = arith.constant 0 : i32
    return %arg0, %c0_i32, %c0_i32_0 : i32, i32, i32
  }
  func.func @transform_1(%arg0: i32) -> (i32, i32) {
    %c0_i32 = arith.constant 0 : i32
    %c0_i32_0 = arith.constant 0 : i32
    %c0_i32_1 = arith.constant 0 : i32
    return %c0_i32, %c0_i32_0 : i32, i32
  }
  func.func @transform_2(%arg0: i32) -> (i32, i32) {
    %c0_i32 = arith.constant 0 : i32
    %c0_i32_0 = arith.constant 0 : i32
    %c0_i32_1 = arith.constant 0 : i32
    return %c0_i32, %c0_i32_0 : i32, i32
  }
  func.func @transform_3(%arg0: i32) -> (i32, i32) {
    %c0_i32 = arith.constant 0 : i32
    %c0_i32_0 = arith.constant 0 : i32
    %c0_i32_1 = arith.constant 0 : i32
    return %c0_i32, %c0_i32_0 : i32, i32
  }
  func.func @transform_4(%arg0: i32) -> (i32, i32, i32) {
    %c0_i32 = arith.constant 0 : i32
    %c0_i32_0 = arith.constant 0 : i32
    %c0_i32_1 = arith.constant 0 : i32
    return %arg0, %c0_i32, %c0_i32_0 : i32, i32, i32
  }
}

</mosaic_0001>

<llo_original>
// kernel: tpu_custom_call.1
$region0: #{tpu_custom_call.1}
  #allocation0 [shape = 'u32[]', space=smem, size = 0x4, offset = 0x4, fixed_abs, tag = 'smem constant byte address 0x4 - core index']
  #allocation1 [shape = 'u32[144,128]{1,0:T(1,128)}', space=vmem, size = 0x12000, scoped, tag = 'internal scratch']
  #allocation2 [shape = 'f32[4,512]{1,0:T(4,128)}', space=vmem, size = 0x2000, scoped, tag = 'scratch operand']
  %s0 = inlined_call_operand.hbm [shape: f32[2,4,256], index: 0, kind: input, shape index: {}]
  %s1 = inlined_call_operand.vmem [shape: f32[4,2], index: 1, kind: input, shape index: {}]
  %s2 = inlined_call_operand.vmem [shape: f32[4,2], index: 2, kind: input, shape index: {}]
  %s3 = inlined_call_operand.vmem [shape: f32[4,49], index: 3, kind: input, shape index: {}]
  %s4 = inlined_call_operand.hbm [shape: f32[2,4,256], index: 4, kind: output, shape index: {}]
  %s5 = sld [smem:[#allocation0]]
  $region53: #{tpu_custom_call.1} parent=0
    _
  %s7 = ssub.s32 1, %s5
  %s8 = scalar_select 0, %s7, %s5
  $region1: #{tpu_custom_call.1} parent=0
    #allocation3 [shape = 'u8[8192]{0}', space=vmem, size = 0x2000, scoped, tag = 'input window, operand 0']
    #allocation4 [shape = 's32[2]{0}', space=sflag, size = 0x8, scoped, tag = 'scoped memory for tpu_custom_call.1']
    #allocation5 [shape = 's32[2]{0}', space=sflag, size = 0x8, scoped, tag = 'scoped memory for tpu_custom_call.1']
    #allocation6 [shape = 'u8[8192]{0}', space=vmem, size = 0x2000, scoped, tag = 'output window, operand 0']
    %9 = vsyncpa [#allocation4], 0
    %s10 = scalar_lea.sflag [#allocation4], 1
    %11 = vsyncpa %s10, 0
    %12 = vsyncpa [#allocation5], 0
    %s13 = scalar_lea.sflag [#allocation5], 1
    %14 = vsyncpa %s13, 0
    loop: start=0, step=1, limit=4
    $region2: #{tpu_custom_call.1} parent=1 // loop_pre_header
      _
    $region3: #{tpu_custom_call.1} parent=1 // loop_header
      %s16 = sphi 0, %s20
      %p17 = scmp.ge.s32.totalorder %s16, 4
      %s26 = sphi 0, %s28
      %s29 = sphi 0, %s26
      %s30 = sphi 0, %s29
      %s46 = sphi 0, %s30
      %s50 = sphi 0, %s50
      %s52 = sphi 0, %s50
      %s53 = sphi 0, %s52
      %s67 = sphi 0, %s53
      %s71 = sphi 0, %s71
      %s73 = sphi 0, %s71
      %s74 = sphi 0, %s73
      %s88 = sphi 0, %s74
      %s92 = sphi 0, %s92
      %s94 = sphi 0, %s92
      %s95 = sphi 0, %s94
      %s109 = sphi 0, %s95
      %s115 = sphi 0, %s117
      %s118 = sphi 0, %s115
      %s119 = sphi 0, %s118
      %s135 = sphi 0, %s119
    $region4: #{tpu_custom_call.1} parent=1 // loop_header_branch
      %19 = sbr.rel (%p17) target = $region8
    $region5: #{tpu_custom_call.1} parent=1 // loop_body
      %s21 = ssub.s32 %s16, 1
      %s22 = ssub.s32 %s16, 2
      %s23 = sadd.s32 %s16, 1
      %s24 = ssub.s32 %s16, %s23
      %p25 = scmp.eq.s32.totalorder %s24, 0
      %s27 = sadd.s32 %s26, 1
      %s28 = scalar_select %p25, %s26, %s27
      %p31 = pneg %p25
      %p32 = scmp.eq.s32.totalorder %s16, 1
      %p33 = por %p31, %p32
      %p34 = scmp.ne.s32.totalorder %s26, %s29
      %p35 = scmp.eq.s32.totalorder %s16, 0
      %p36 = por %p34, %p35
      %p37 = scmp.ne.s32.totalorder %s26, %s29
      %p38 = scmp.eq.s32.totalorder %s21, 1
      %p39 = por %p37, %p38
      %p40 = scmp.ne.s32.totalorder %s29, %s30
      %p41 = scmp.eq.s32.totalorder %s21, 0
      %p42 = por %p40, %p41
      %p43 = scmp.ne.s32.totalorder %s29, %s30
      %p44 = scmp.eq.s32.totalorder %s22, 1
      %p45 = por %p43, %p44
      %p47 = scmp.ne.s32.totalorder %s30, %s46
      %p48 = scmp.eq.s32.totalorder %s22, 0
      %p49 = por %p47, %p48
      %s51 = sadd.s32 %s50, 1
      %p54 = scmp.eq.s32.totalorder %s16, 1
      %p55 = scmp.ne.s32.totalorder %s50, %s52
      %p56 = scmp.eq.s32.totalorder %s16, 0
      %p57 = por %p55, %p56
      %p58 = scmp.ne.s32.totalorder %s50, %s52
      %p59 = scmp.eq.s32.totalorder %s21, 1
      %p60 = por %p58, %p59
      %p61 = scmp.ne.s32.totalorder %s52, %s53
      %p62 = scmp.eq.s32.totalorder %s21, 0
      %p63 = por %p61, %p62
      %p64 = scmp.ne.s32.totalorder %s52, %s53
      %p65 = scmp.eq.s32.totalorder %s22, 1
      %p66 = por %p64, %p65
      %p68 = scmp.ne.s32.totalorder %s53, %s67
      %p69 = scmp.eq.s32.totalorder %s22, 0
      %p70 = por %p68, %p69
      %s72 = sadd.s32 %s71, 1
      %p75 = scmp.eq.s32.totalorder %s16, 1
      %p76 = scmp.ne.s32.totalorder %s71, %s73
      %p77 = scmp.eq.s32.totalorder %s16, 0
      %p78 = por %p76, %p77
      %p79 = scmp.ne.s32.totalorder %s71, %s73
      %p80 = scmp.eq.s32.totalorder %s21, 1
      %p81 = por %p79, %p80
      %p82 = scmp.ne.s32.totalorder %s73, %s74
      %p83 = scmp.eq.s32.totalorder %s21, 0
      %p84 = por %p82, %p83
      %p85 = scmp.ne.s32.totalorder %s73, %s74
      %p86 = scmp.eq.s32.totalorder %s22, 1
      %p87 = por %p85, %p86
      %p89 = scmp.ne.s32.totalorder %s74, %s88
      %p90 = scmp.eq.s32.totalorder %s22, 0
      %p91 = por %p89, %p90
      %s93 = sadd.s32 %s92, 1
      %p96 = scmp.eq.s32.totalorder %s16, 1
      %p97 = scmp.ne.s32.totalorder %s92, %s94
      %p98 = scmp.eq.s32.totalorder %s16, 0
      %p99 = por %p97, %p98
      %p100 = scmp.ne.s32.totalorder %s92, %s94
      %p101 = scmp.eq.s32.totalorder %s21, 1
      %p102 = por %p100, %p101
      %p103 = scmp.ne.s32.totalorder %s94, %s95
      %p104 = scmp.eq.s32.totalorder %s21, 0
      %p105 = por %p103, %p104
      %p106 = scmp.ne.s32.totalorder %s94, %s95
      %p107 = scmp.eq.s32.totalorder %s22, 1
      %p108 = por %p106, %p107
      %p110 = scmp.ne.s32.totalorder %s95, %s109
      %p111 = scmp.eq.s32.totalorder %s22, 0
      %p112 = por %p110, %p111
      %s113 = ssub.s32 %s16, %s23
      %p114 = scmp.eq.s32.totalorder %s113, 0
      %s116 = sadd.s32 %s115, 1
      %s117 = scalar_select %p114, %s115, %s116
      %p120 = pneg %p114
      %p121 = scmp.eq.s32.totalorder %s16, 1
      %p122 = por %p120, %p121
      %p123 = scmp.ne.s32.totalorder %s115, %s118
      %p124 = scmp.eq.s32.totalorder %s16, 0
      %p125 = por %p123, %p124
      %p126 = scmp.ne.s32.totalorder %s115, %s118
      %p127 = scmp.eq.s32.totalorder %s21, 1
      %p128 = por %p126, %p127
      %p129 = scmp.ne.s32.totalorder %s118, %s119
      %p130 = scmp.eq.s32.totalorder %s21, 0
      %p131 = por %p129, %p130
      %p132 = scmp.ne.s32.totalorder %s118, %s119
      %p133 = scmp.eq.s32.totalorder %s22, 1
      %p134 = por %p132, %p133
      %p136 = scmp.ne.s32.totalorder %s119, %s135
      %p137 = scmp.eq.s32.totalorder %s22, 0
      %p138 = por %p136, %p137
      %p139 = scmp.le.s32.totalorder 1, %s16
      %p140 = scmp.lt.s32.totalorder %s16, 3
      %p141 = pnand %p139, %p140
      %p142 = pneg %p141
      // Predicated region
      $region9: #{tpu_custom_call.1} parent=5 // pred_check
        _
      $region10: #{tpu_custom_call.1} parent=5 // pred_check_branch
        %144 = sbr.rel (%p141) target = $region12
      $region11: #{tpu_custom_call.1} parent=5 // pred_region
        %s145 = ssub.s32 %s16, 1
        // Predicated region
        $region13: #{tpu_custom_call.1} parent=11 // pred_check
          %p146 = pneg %p63
        $region14: #{tpu_custom_call.1} parent=11 // pred_check_branch
          %148 = sbr.rel (%p146) target = $region16
        $region15: #{tpu_custom_call.1} parent=11 // pred_region
          _
        $region16: #{tpu_custom_call.1} parent=11 // pred_fallthru
          _
        // Predicated region
        $region17: #{tpu_custom_call.1} parent=11 // pred_check
          %p149 = pneg %p84
        $region18: #{tpu_custom_call.1} parent=11 // pred_check_branch
          %151 = sbr.rel (%p149) target = $region20
        $region19: #{tpu_custom_call.1} parent=11 // pred_region
          _
        $region20: #{tpu_custom_call.1} parent=11 // pred_fallthru
          _
        // Predicated region
        $region21: #{tpu_custom_call.1} parent=11 // pred_check
          %p152 = pneg %p105
        $region22: #{tpu_custom_call.1} parent=11 // pred_check_branch
          %154 = sbr.rel (%p152) target = $region24
        $region23: #{tpu_custom_call.1} parent=11 // pred_region
          _
        $region24: #{tpu_custom_call.1} parent=11 // pred_fallthru
          _
      $region12: #{tpu_custom_call.1} parent=5 // pred_fallthru
        _
      %p155 = scmp.lt.s32.totalorder %s16, 2
      // Predicated region
      $region25: #{tpu_custom_call.1} parent=5 // pred_check
        %p156 = pneg %p155
      $region26: #{tpu_custom_call.1} parent=5 // pred_check_branch
        %158 = sbr.rel (%p156) target = $region28
      $region27: #{tpu_custom_call.1} parent=5 // pred_region
        // Predicated region
        $region29: #{tpu_custom_call.1} parent=27 // pred_check
          %p159 = pneg %p36
        $region30: #{tpu_custom_call.1} parent=27 // pred_check_branch
          %161 = sbr.rel (%p159) target = $region32
        $region31: #{tpu_custom_call.1} parent=27 // pred_region
          %s162 = sand.u32 %s26, 1
          %s163 = scalar_lea.sflag [#allocation4], %s162
          %s164 = sand.u32 %s26, 1
          %s165 = smul.addr %s164, 8
          %s166 = scalar_lea.vmem [#allocation3], %s165
          %s168 = ssub.s32 128, 128
          %169 = vsyncadd %s163, %s168
          %s170 = smul.addr %s16, 2
          %s171 = smul.addr %s170, 64
          %s172 = scalar_lea.hbm %s0, %s171
          %s174 = sshll.u32 %s166, 4
          %s175 = int_to_ptr.vmem [resolvable:$true] %s174
          %177 = dma.hbm_to_vmem [thread:$0]  %s172, 128, %s175, %s163
        $region32: #{tpu_custom_call.1} parent=27 // pred_fallthru
          _
      $region28: #{tpu_custom_call.1} parent=5 // pred_fallthru
        _
      %p178 = scmp.le.s32.totalorder 1, %s16
      %p179 = scmp.lt.s32.totalorder %s16, 3
      %p180 = pnand %p178, %p179
      %p181 = pneg %p180
      // Predicated region
      $region33: #{tpu_custom_call.1} parent=5 // pred_check
        _
      $region34: #{tpu_custom_call.1} parent=5 // pred_check_branch
        %183 = sbr.rel (%p180) target = $region36
      $region35: #{tpu_custom_call.1} parent=5 // pred_region
        %s184 = ssub.s32 %s16, 1
        %s185 = sand.u32 %s29, 1
        %s186 = scalar_lea.sflag [#allocation4], %s185
        %s187 = sand.u32 %s29, 1
        %s188 = smul.addr %s187, 8
        %s189 = scalar_lea.vmem [#allocation3], %s188
        // Predicated region
        $region37: #{tpu_custom_call.1} parent=35 // pred_check
          %p190 = pneg %p42
        $region38: #{tpu_custom_call.1} parent=35 // pred_check_branch
          %192 = sbr.rel (%p190) target = $region40
        $region39: #{tpu_custom_call.1} parent=35 // pred_region
          %193 = dma.done %s186, 128
        $region40: #{tpu_custom_call.1} parent=35 // pred_fallthru
          _
        %s194 = sand.u32 %s29, 1
        %s195 = scalar_lea.sflag [#allocation4], %s194
        %s196 = sand.u32 %s29, 1
        %s197 = smul.addr %s196, 8
        %s198 = scalar_lea.vmem [#allocation3], %s197
        %p199 = pneg %p42
        %p200 = pneg %p39
        %p201 = pneg %p63
        %p202 = pneg %p60
        %p203 = pneg %p84
        %p204 = pneg %p81
        %p205 = pneg %p105
        %p206 = pneg %p102
        %p207 = pneg %p131
        %p208 = pneg %p128
        %s209 = sand.u32 %s118, 1
        %s210 = scalar_lea.sflag [#allocation5], %s209
        %s211 = sand.u32 %s118, 1
        %s212 = smul.addr %s211, 8
        %s213 = scalar_lea.vmem [#allocation6], %s212
        %v214 = vld [vmem:[%s189] sm:$0xff]
        %v216 = vcombine.high %v214, %v214
        %vm218 = vcmask 1043456
        %v219 = vsel %vm218, %v214, 0.0
        %v220 = vsel %vm218, %v216, 0.0
        %v221 = vadd.f32 %v219, %v220
        %222 = vadd.xlane.f32.xlu0 %v221
        %v223 = vpop.xlane.xlu0 %222
        %v224 = vmul.f32 %v223, 0.00390625
        %v225 = vld [vmem:[%s1] sm:$0xf]
        %v226 = vmul.f32 %v225, %v224
        %vm227 = vcmask 11264
        %v228 = vsel %vm227, %v226, 0.0
        %v229 = vrot.slane %v228, 4
        %v230 = vadd.f32 %v228, %v229
        %v231 = vrot.slane %v230, 2
        %v232 = vadd.f32 %v230, %v231
        %v233 = vrot.slane %v232, 1
        %v234 = vadd.f32 %v232, %v233
        %v235 = vmax.f32 %v234, 0.0
        %v236 = vld [vmem:[%s2] sm:$0xf]
        %v237 = vmul.f32 %v236, %v235
        %v238 = vsel %vm227, %v237, 0.0
        %239 = vadd.xlane.f32.xlu0 %v238
        %v240 = vpop.xlane.xlu0 %239
        %v241 = vxor.u32 %v240, 2147483648
        %v242 = vmul.f32 %v241, 1.442695
        %v243 = vpow.pop %v242
        %v244 = vadd.f32 %v243, 1.0
        %v245 = vrcp.pop %v244
        %v246 = vmul.f32 1.0, %v245
        %247 = vst [vmem:[#allocation2] sm:$0xf] 0.0
        %248 = vst [vmem:[#allocation2 + $0xc] sm:$0xf] 0.0
        %249 = vst [vmem:[#allocation2 + $0x4] sm:$0xff] %v214
        %v250 = vlaneseq
        %v251 = vand.u32 %v250, 127
        %v252 = vadd.s32 %v251, 128
        %vm253 = vcmp.lt.s32.totalorder %v251, 0
        %v254 = vsub.s32 0, %v251
        %v255 = vsel %vm253, %v254, %v251
        %v256 = vshrl.u32 %v255, 4
        %v257 = vand.u32 %v255, 15
        %v258 = vsub.s32 0, %v257
        %v259 = vsel %vm253, %v258, %v257
        %vm260 = vcmp.lt.s32.totalorder %v252, 0
        %v261 = vsub.s32 0, %v252
        %v262 = vsel %vm260, %v261, %v252
        %v263 = vshrl.u32 %v262, 4
        %v264 = vand.u32 %v262, 15
        %v265 = vsub.s32 0, %v264
        %v266 = vsel %vm260, %v265, %v264
        %vm267 = vcmp.ne.s32.totalorder %v259, 0
        %vm268 = vcmp.ne.s32.totalorder %v266, 0
        %vm269 = vcmp.lt.s32.totalorder %v259, 0
        %vm270 = vcmp.lt.s32.totalorder %v266, 0
        %vm271 = vmand %vm269, %vm267
        %vm272 = vmand %vm270, %vm268
        %v273 = vadd.s32 %v259, 16
        %v274 = vadd.s32 %v266, 16
        %v275 = vsel %vm271, %v273, %v259
        %v276 = vsel %vm272, %v274, %v266
        %v277 = vadd.s32 %v275, 4294967293
        %v278 = vadd.s32 %v276, 4294967293
        %vm279 = vcmp.ge.s32.totalorder %v277, 0
        %vm280 = vcmp.ge.s32.totalorder %v278, 0
        %vm281 = vcmp.lt.s32.totalorder %v277, 16
        %vm282 = vcmp.lt.s32.totalorder %v278, 16
        %vm283 = vmand %vm279, %vm281
        %vm284 = vmand %vm280, %vm282
        %v285 = vsel %vm283, 1, 0
        %v286 = vsel %vm284, 1, 0
        %v287 = vcvt.s32.f32 %v285
        %v288 = vcvt.s32.f32 %v286
        %v289 = vadd.s32 %v275, 4294967294
        %v290 = vadd.s32 %v276, 4294967294
        %vm291 = vcmp.ge.s32.totalorder %v289, 0
        %vm292 = vcmp.ge.s32.totalorder %v290, 0
        %vm293 = vcmp.lt.s32.totalorder %v289, 16
        %vm294 = vcmp.lt.s32.totalorder %v290, 16
        %vm295 = vmand %vm291, %vm293
        %vm296 = vmand %vm292, %vm294
        %v297 = vsel %vm295, 1, 0
        %v298 = vsel %vm296, 1, 0
        %v299 = vcvt.s32.f32 %v297
        %v300 = vcvt.s32.f32 %v298
        %v301 = vadd.s32 %v275, 4294967295
        %v302 = vadd.s32 %v276, 4294967295
        %vm303 = vcmp.ge.s32.totalorder %v301, 0
        %vm304 = vcmp.ge.s32.totalorder %v302, 0
        %vm305 = vcmp.lt.s32.totalorder %v301, 16
        %vm306 = vcmp.lt.s32.totalorder %v302, 16
        %vm307 = vmand %vm303, %vm305
        %vm308 = vmand %vm304, %vm306
        %v309 = vsel %vm307, 1, 0
        %v310 = vsel %vm308, 1, 0
        %v311 = vcvt.s32.f32 %v309
        %v312 = vcvt.s32.f32 %v310
        %v313 = vadd.s32 %v275, 1
        %v314 = vadd.s32 %v276, 1
        %vm315 = vcmp.ge.s32.totalorder %v313, 0
        %vm316 = vcmp.ge.s32.totalorder %v314, 0
        %vm317 = vcmp.lt.s32.totalorder %v313, 16
        %vm318 = vcmp.lt.s32.totalorder %v314, 16
        %vm319 = vmand %vm315, %vm317
        %vm320 = vmand %vm316, %vm318
        %v321 = vsel %vm319, 1, 0
        %v322 = vsel %vm320, 1, 0
        %v323 = vcvt.s32.f32 %v321
        %v324 = vcvt.s32.f32 %v322
        %v325 = vadd.s32 %v275, 2
        %v326 = vadd.s32 %v276, 2
        %vm327 = vcmp.ge.s32.totalorder %v325, 0
        %vm328 = vcmp.ge.s32.totalorder %v326, 0
        %vm329 = vcmp.lt.s32.totalorder %v325, 16
        %vm330 = vcmp.lt.s32.totalorder %v326, 16
        %vm331 = vmand %vm327, %vm329
        %vm332 = vmand %vm328, %vm330
        %v333 = vsel %vm331, 1, 0
        %v334 = vsel %vm332, 1, 0
        %v335 = vcvt.s32.f32 %v333
        %v336 = vcvt.s32.f32 %v334
        %v337 = vadd.s32 %v275, 3
        %v338 = vadd.s32 %v276, 3
        %vm339 = vcmp.ge.s32.totalorder %v337, 0
        %vm340 = vcmp.ge.s32.totalorder %v338, 0
        %vm341 = vcmp.lt.s32.totalorder %v337, 16
        %vm342 = vcmp.lt.s32.totalorder %v338, 16
        %vm343 = vmand %vm339, %vm341
        %vm344 = vmand %vm340, %vm342
        %v345 = vsel %vm343, 1, 0
        %v346 = vsel %vm344, 1, 0
        %v347 = vcvt.s32.f32 %v345
        %v348 = vcvt.s32.f32 %v346
        %v349 = vld [vmem:[%s3] sm:$0xf]
        %v350 = vld [vmem:[#allocation2] sm:$0xff]
        %v351 = vld [vmem:[#allocation2 + $0x8] sm:$0xf]
        %v354 = vcombine.low %v287, %v288
        %355 = vrot.lane.b32.xlu0 %v354, 77
        %v356 = vpop.permute.xlu0 %355
        %v357 = vrot.slane %v356, 4
        %vm358 = vcmask 629760
        %v359 = vsel %vm358, %v357, %v356
        %v362 = vmul.f32 %v350, %v359
        %v363 = vmul.f32 %v351, %v357
        %365 = vset.pattern.permute.xlu0 0
        %366 = vperm.xlu0 %365, %v349
        %v367 = vpop.permute.xlu0 %366
        %v371 = vcombine.high %v362, %v362
        %372 = vrot.lane.b32.xlu0 %v362, 51
        %v373 = vpop.permute.xlu0 %372
        %374 = vrot.lane.b32.xlu0 %v371, 51
        %v375 = vpop.permute.xlu0 %374
        %376 = vrot.lane.b32.xlu0 %v363, 51
        %v377 = vpop.permute.xlu0 %376
        %vm378 = vcmask 416768
        %v379 = vsel %vm378, %v373, %v375
        %v380 = vsel %vm378, %v375, %v377
        %v383 = vmul.f32 %v367, %v379
        %v384 = vmul.f32 %v367, %v380
        %v385 = vadd.f32 %v383, 0.0
        %v386 = vadd.f32 %v384, 0.0
        %v387 = vld [vmem:[#allocation2] sm:$0xff]
        %v388 = vld [vmem:[#allocation2 + $0x8] sm:$0xf]
        %v391 = vcombine.low %v299, %v300
        %392 = vrot.lane.b32.xlu0 %v391, 78
        %v393 = vpop.permute.xlu0 %392
        %v394 = vrot.slane %v393, 4
        %vm395 = vcmask 637952
        %v396 = vsel %vm395, %v394, %v393
        %v399 = vmul.f32 %v387, %v396
        %v400 = vmul.f32 %v388, %v394
        %401 = vset.pattern.permute.xlu0 1
        %402 = vperm.xlu0 %401, %v349
        %v403 = vpop.permute.xlu0 %402
        %v407 = vcombine.high %v399, %v399
        %408 = vrot.lane.b32.xlu0 %v399, 50
        %v409 = vpop.permute.xlu0 %408
        %410 = vrot.lane.b32.xlu0 %v407, 50
        %v411 = vpop.permute.xlu0 %410
        %412 = vrot.lane.b32.xlu0 %v400, 50
        %v413 = vpop.permute.xlu0 %412
        %vm414 = vcmask 408576
        %v415 = vsel %vm414, %v409, %v411
        %v416 = vsel %vm414, %v411, %v413
        %v419 = vmul.f32 %v403, %v415
        %v420 = vmul.f32 %v403, %v416
        %v421 = vadd.f32 %v385, %v419
        %v422 = vadd.f32 %v386, %v420
        %v423 = vld [vmem:[#allocation2] sm:$0xff]
        %v424 = vld [vmem:[#allocation2 + $0x8] sm:$0xf]
        %v427 = vcombine.low %v311, %v312
        %428 = vrot.lane.b32.xlu0 %v427, 79
        %v429 = vpop.permute.xlu0 %428
        %v430 = vrot.slane %v429, 4
        %vm431 = vcmask 646144
        %v432 = vsel %vm431, %v430, %v429
        %v435 = vmul.f32 %v423, %v432
        %v436 = vmul.f32 %v424, %v430
        %437 = vset.pattern.permute.xlu0 2
        %438 = vperm.xlu0 %437, %v349
        %v439 = vpop.permute.xlu0 %438
        %v443 = vcombine.high %v435, %v435
        %444 = vrot.lane.b32.xlu0 %v435, 49
        %v445 = vpop.permute.xlu0 %444
        %446 = vrot.lane.b32.xlu0 %v443, 49
        %v447 = vpop.permute.xlu0 %446
        %448 = vrot.lane.b32.xlu0 %v436, 49
        %v449 = vpop.permute.xlu0 %448
        %vm450 = vcmask 400384
        %v451 = vsel %vm450, %v445, %v447
        %v452 = vsel %vm450, %v447, %v449
        %v455 = vmul.f32 %v439, %v451
        %v456 = vmul.f32 %v439, %v452
        %v457 = vadd.f32 %v421, %v455
        %v458 = vadd.f32 %v422, %v456
        %v459 = vld [vmem:[#allocation2] sm:$0xff]
        %v460 = vld [vmem:[#allocation2 + $0x8] sm:$0xf]
        %461 = vset.pattern.permute.xlu0 3
        %462 = vperm.xlu0 %461, %v349
        %v463 = vpop.permute.xlu0 %462
        %v467 = vcombine.high %v459, %v459
        %468 = vrot.lane.b32.xlu0 %v459, 48
        %v469 = vpop.permute.xlu0 %468
        %470 = vrot.lane.b32.xlu0 %v467, 48
        %v471 = vpop.permute.xlu0 %470
        %472 = vrot.lane.b32.xlu0 %v460, 48
        %v473 = vpop.permute.xlu0 %472
        %vm474 = vcmask 392192
        %v475 = vsel %vm474, %v469, %v471
        %v476 = vsel %vm474, %v471, %v473
        %v479 = vmul.f32 %v463, %v475
        %v480 = vmul.f32 %v463, %v476
        %v481 = vadd.f32 %v457, %v479
        %v482 = vadd.f32 %v458, %v480
        %v483 = vld [vmem:[#allocation2] sm:$0xff]
        %v484 = vld [vmem:[#allocation2 + $0x8] sm:$0xf]
        %v487 = vcombine.low %v323, %v324
        %488 = vrot.lane.b32.xlu0 %v487, 81
        %v489 = vpop.permute.xlu0 %488
        %v490 = vrot.slane %v489, 4
        %vm491 = vcmask 662528
        %v492 = vsel %vm491, %v490, %v489
        %v495 = vmul.f32 %v483, %v492
        %v496 = vmul.f32 %v484, %v490
        %497 = vset.pattern.permute.xlu0 4
        %498 = vperm.xlu0 %497, %v349
        %v499 = vpop.permute.xlu0 %498
        %v503 = vcombine.high %v495, %v495
        %504 = vrot.lane.b32.xlu0 %v495, 47
        %v505 = vpop.permute.xlu0 %504
        %506 = vrot.lane.b32.xlu0 %v503, 47
        %v507 = vpop.permute.xlu0 %506
        %508 = vrot.lane.b32.xlu0 %v496, 47
        %v509 = vpop.permute.xlu0 %508
        %vm510 = vcmask 384000
        %v511 = vsel %vm510, %v505, %v507
        %v512 = vsel %vm510, %v507, %v509
        %v515 = vmul.f32 %v499, %v511
        %v516 = vmul.f32 %v499, %v512
        %v517 = vadd.f32 %v481, %v515
        %v518 = vadd.f32 %v482, %v516
        %v519 = vld [vmem:[#allocation2] sm:$0xff]
        %v520 = vld [vmem:[#allocation2 + $0x8] sm:$0xf]
        %v523 = vcombine.low %v335, %v336
        %524 = vrot.lane.b32.xlu0 %v523, 82
        %v525 = vpop.permute.xlu0 %524
        %v526 = vrot.slane %v525, 4
        %vm527 = vcmask 670720
        %v528 = vsel %vm527, %v526, %v525
        %v531 = vmul.f32 %v519, %v528
        %v532 = vmul.f32 %v520, %v526
        %533 = vset.pattern.permute.xlu0 5
        %534 = vperm.xlu0 %533, %v349
        %v535 = vpop.permute.xlu0 %534
        %v539 = vcombine.high %v531, %v531
        %540 = vrot.lane.b32.xlu0 %v531, 46
        %v541 = vpop.permute.xlu0 %540
        %542 = vrot.lane.b32.xlu0 %v539, 46
        %v543 = vpop.permute.xlu0 %542
        %544 = vrot.lane.b32.xlu0 %v532, 46
        %v545 = vpop.permute.xlu0 %544
        %vm546 = vcmask 375808
        %v547 = vsel %vm546, %v541, %v543
        %v548 = vsel %vm546, %v543, %v545
        %v551 = vmul.f32 %v535, %v547
        %v552 = vmul.f32 %v535, %v548
        %v553 = vadd.f32 %v517, %v551
        %v554 = vadd.f32 %v518, %v552
        %v555 = vld [vmem:[#allocation2] sm:$0xff]
        %v556 = vld [vmem:[#allocation2 + $0x8] sm:$0xf]
        %v559 = vcombine.low %v347, %v348
        %560 = vrot.lane.b32.xlu0 %v559, 83
        %v561 = vpop.permute.xlu0 %560
        %v562 = vrot.slane %v561, 4
        %vm563 = vcmask 678912
        %v564 = vsel %vm563, %v562, %v561
        %v567 = vmul.f32 %v555, %v564
        %v568 = vmul.f32 %v556, %v562
        %569 = vset.pattern.permute.xlu0 6
        %570 = vperm.xlu0 %569, %v349
        %v571 = vpop.permute.xlu0 %570
        %v575 = vcombine.high %v567, %v567
        %576 = vrot.lane.b32.xlu0 %v567, 45
        %v577 = vpop.permute.xlu0 %576
        %578 = vrot.lane.b32.xlu0 %v575, 45
        %v579 = vpop.permute.xlu0 %578
        %580 = vrot.lane.b32.xlu0 %v568, 45
        %v581 = vpop.permute.xlu0 %580
        %vm582 = vcmask 367616
        %v583 = vsel %vm582, %v577, %v579
        %v584 = vsel %vm582, %v579, %v581
        %v587 = vmul.f32 %v571, %v583
        %v588 = vmul.f32 %v571, %v584
        %v589 = vadd.f32 %v553, %v587
        %v590 = vadd.f32 %v554, %v588
        %v591 = vld [vmem:[#allocation2] sm:$0xff]
        %v592 = vld [vmem:[#allocation2 + $0x8] sm:$0xf]
        %593 = vrot.lane.b32.xlu0 %v354, 93
        %v594 = vpop.permute.xlu0 %593
        %v595 = vrot.slane %v594, 4
        %vm596 = vcmask 760832
        %v597 = vsel %vm596, %v595, %v594
        %v600 = vmul.f32 %v591, %v597
        %v601 = vmul.f32 %v592, %v595
        %602 = vset.pattern.permute.xlu0 7
        %603 = vperm.xlu0 %602, %v349
        %v604 = vpop.permute.xlu0 %603
        %v608 = vcombine.high %v600, %v600
        %609 = vrot.lane.b32.xlu0 %v600, 35
        %v610 = vpop.permute.xlu0 %609
        %611 = vrot.lane.b32.xlu0 %v608, 35
        %v612 = vpop.permute.xlu0 %611
        %613 = vrot.lane.b32.xlu0 %v601, 35
        %v614 = vpop.permute.xlu0 %613
        %vm615 = vcmask 285696
        %v616 = vsel %vm615, %v610, %v612
        %v617 = vsel %vm615, %v612, %v614
        %v620 = vmul.f32 %v604, %v616
        %v621 = vmul.f32 %v604, %v617
        %v622 = vadd.f32 %v589, %v620
        %v623 = vadd.f32 %v590, %v621
        %v624 = vld [vmem:[#allocation2] sm:$0xff]
        %v625 = vld [vmem:[#allocation2 + $0x8] sm:$0xf]
        %626 = vrot.lane.b32.xlu0 %v391, 94
        %v627 = vpop.permute.xlu0 %626
        %v628 = vrot.slane %v627, 4
        %vm629 = vcmask 769024
        %v630 = vsel %vm629, %v628, %v627
        %v633 = vmul.f32 %v624, %v630
        %v634 = vmul.f32 %v625, %v628
        %635 = vset.pattern.permute.xlu0 8
        %636 = vperm.xlu0 %635, %v349
        %v637 = vpop.permute.xlu0 %636
        %v641 = vcombine.high %v633, %v633
        %642 = vrot.lane.b32.xlu0 %v633, 34
        %v643 = vpop.permute.xlu0 %642
        %644 = vrot.lane.b32.xlu0 %v641, 34
        %v645 = vpop.permute.xlu0 %644
        %646 = vrot.lane.b32.xlu0 %v634, 34
        %v647 = vpop.permute.xlu0 %646
        %vm648 = vcmask 277504
        %v649 = vsel %vm648, %v643, %v645
        %v650 = vsel %vm648, %v645, %v647
        %v653 = vmul.f32 %v637, %v649
        %v654 = vmul.f32 %v637, %v650
        %v655 = vadd.f32 %v622, %v653
        %v656 = vadd.f32 %v623, %v654
        %v657 = vld [vmem:[#allocation2] sm:$0xff]
        %v658 = vld [vmem:[#allocation2 + $0x8] sm:$0xf]
        %659 = vrot.lane.b32.xlu0 %v427, 95
        %v660 = vpop.permute.xlu0 %659
        %v661 = vrot.slane %v660, 4
        %vm662 = vcmask 777216
        %v663 = vsel %vm662, %v661, %v660
        %v666 = vmul.f32 %v657, %v663
        %v667 = vmul.f32 %v658, %v661
        %668 = vset.pattern.permute.xlu0 9
        %669 = vperm.xlu0 %668, %v349
        %v670 = vpop.permute.xlu0 %669
        %v674 = vcombine.high %v666, %v666
        %675 = vrot.lane.b32.xlu0 %v666, 33
        %v676 = vpop.permute.xlu0 %675
        %677 = vrot.lane.b32.xlu0 %v674, 33
        %v678 = vpop.permute.xlu0 %677
        %679 = vrot.lane.b32.xlu0 %v667, 33
        %v680 = vpop.permute.xlu0 %679
        %vm681 = vcmask 269312
        %v682 = vsel %vm681, %v676, %v678
        %v683 = vsel %vm681, %v678, %v680
        %v686 = vmul.f32 %v670, %v682
        %v687 = vmul.f32 %v670, %v683
        %v688 = vadd.f32 %v655, %v686
        %v689 = vadd.f32 %v656, %v687
        %v690 = vld [vmem:[#allocation2] sm:$0xff]
        %v691 = vld [vmem:[#allocation2 + $0x8] sm:$0xf]
        %692 = vset.pattern.permute.xlu0 10
        %693 = vperm.xlu0 %692, %v349
        %v694 = vpop.permute.xlu0 %693
        %v698 = vcombine.high %v690, %v690
        %699 = vrot.lane.b32.xlu0 %v690, 32
        %v700 = vpop.permute.xlu0 %699
        %701 = vrot.lane.b32.xlu0 %v698, 32
        %v702 = vpop.permute.xlu0 %701
        %703 = vrot.lane.b32.xlu0 %v691, 32
        %v704 = vpop.permute.xlu0 %703
        %vm705 = vcmask 261120
        %v706 = vsel %vm705, %v700, %v702
        %v707 = vsel %vm705, %v702, %v704
        %v710 = vmul.f32 %v694, %v706
        %v711 = vmul.f32 %v694, %v707
        %v712 = vadd.f32 %v688, %v710
        %v713 = vadd.f32 %v689, %v711
        %v714 = vld [vmem:[#allocation2] sm:$0xff]
        %v715 = vld [vmem:[#allocation2 + $0x8] sm:$0xf]
        %716 = vrot.lane.b32.xlu0 %v487, 97
        %v717 = vpop.permute.xlu0 %716
        %v718 = vrot.slane %v717, 4
        %vm719 = vcmask 793600
        %v720 = vsel %vm719, %v718, %v717
        %v723 = vmul.f32 %v714, %v720
        %v724 = vmul.f32 %v715, %v718
        %725 = vset.pattern.permute.xlu0 11
        %726 = vperm.xlu0 %725, %v349
        %v727 = vpop.permute.xlu0 %726
        %v731 = vcombine.high %v723, %v723
        %732 = vrot.lane.b32.xlu0 %v723, 31
        %v733 = vpop.permute.xlu0 %732
        %734 = vrot.lane.b32.xlu0 %v731, 31
        %v735 = vpop.permute.xlu0 %734
        %736 = vrot.lane.b32.xlu0 %v724, 31
        %v737 = vpop.permute.xlu0 %736
        %vm738 = vcmask 252928
        %v739 = vsel %vm738, %v733, %v735
        %v740 = vsel %vm738, %v735, %v737
        %v743 = vmul.f32 %v727, %v739
        %v744 = vmul.f32 %v727, %v740
        %v745 = vadd.f32 %v712, %v743
        %v746 = vadd.f32 %v713, %v744
        %v747 = vld [vmem:[#allocation2] sm:$0xff]
        %v748 = vld [vmem:[#allocation2 + $0x8] sm:$0xf]
        %749 = vrot.lane.b32.xlu0 %v523, 98
        %v750 = vpop.permute.xlu0 %749
        %v751 = vrot.slane %v750, 4
        %vm752 = vcmask 801792
        %v753 = vsel %vm752, %v751, %v750
        %v756 = vmul.f32 %v747, %v753
        %v757 = vmul.f32 %v748, %v751
        %758 = vset.pattern.permute.xlu0 12
        %759 = vperm.xlu0 %758, %v349
        %v760 = vpop.permute.xlu0 %759
        %v764 = vcombine.high %v756, %v756
        %765 = vrot.lane.b32.xlu0 %v756, 30
        %v766 = vpop.permute.xlu0 %765
        %767 = vrot.lane.b32.xlu0 %v764, 30
        %v768 = vpop.permute.xlu0 %767
        %769 = vrot.lane.b32.xlu0 %v757, 30
        %v770 = vpop.permute.xlu0 %769
        %vm771 = vcmask 244736
        %v772 = vsel %vm771, %v766, %v768
        %v773 = vsel %vm771, %v768, %v770
        %v776 = vmul.f32 %v760, %v772
        %v777 = vmul.f32 %v760, %v773
        %v778 = vadd.f32 %v745, %v776
        %v779 = vadd.f32 %v746, %v777
        %v780 = vld [vmem:[#allocation2] sm:$0xff]
        %v781 = vld [vmem:[#allocation2 + $0x8] sm:$0xf]
        %782 = vrot.lane.b32.xlu0 %v559, 99
        %v783 = vpop.permute.xlu0 %782
        %v784 = vrot.slane %v783, 4
        %vm785 = vcmask 809984
        %v786 = vsel %vm785, %v784, %v783
        %v789 = vmul.f32 %v780, %v786
        %v790 = vmul.f32 %v781, %v784
        %791 = vset.pattern.permute.xlu0 13
        %792 = vperm.xlu0 %791, %v349
        %v793 = vpop.permute.xlu0 %792
        %v797 = vcombine.high %v789, %v789
        %798 = vrot.lane.b32.xlu0 %v789, 29
        %v799 = vpop.permute.xlu0 %798
        %800 = vrot.lane.b32.xlu0 %v797, 29
        %v801 = vpop.permute.xlu0 %800
        %802 = vrot.lane.b32.xlu0 %v790, 29
        %v803 = vpop.permute.xlu0 %802
        %vm804 = vcmask 236544
        %v805 = vsel %vm804, %v799, %v801
        %v806 = vsel %vm804, %v801, %v803
        %v809 = vmul.f32 %v793, %v805
        %v810 = vmul.f32 %v793, %v806
        %v811 = vadd.f32 %v778, %v809
        %v812 = vadd.f32 %v779, %v810
        %v813 = vld [vmem:[#allocation2] sm:$0xff]
        %v814 = vld [vmem:[#allocation2 + $0x8] sm:$0xf]
        %815 = vrot.lane.b32.xlu0 %v354, 109
        %v816 = vpop.permute.xlu0 %815
        %v817 = vrot.slane %v816, 4
        %vm818 = vcmask 891904
        %v819 = vsel %vm818, %v817, %v816
        %v822 = vmul.f32 %v813, %v819
        %v823 = vmul.f32 %v814, %v817
        %824 = vset.pattern.permute.xlu0 14
        %825 = vperm.xlu0 %824, %v349
        %v826 = vpop.permute.xlu0 %825
        %v830 = vcombine.high %v822, %v822
        %831 = vrot.lane.b32.xlu0 %v822, 19
        %v832 = vpop.permute.xlu0 %831
        %833 = vrot.lane.b32.xlu0 %v830, 19
        %v834 = vpop.permute.xlu0 %833
        %835 = vrot.lane.b32.xlu0 %v823, 19
        %v836 = vpop.permute.xlu0 %835
        %vm837 = vcmask 154624
        %v838 = vsel %vm837, %v832, %v834
        %v839 = vsel %vm837, %v834, %v836
        %v842 = vmul.f32 %v826, %v838
        %v843 = vmul.f32 %v826, %v839
        %v844 = vadd.f32 %v811, %v842
        %v845 = vadd.f32 %v812, %v843
        %v846 = vld [vmem:[#allocation2] sm:$0xff]
        %v847 = vld [vmem:[#allocation2 + $0x8] sm:$0xf]
        %848 = vrot.lane.b32.xlu0 %v391, 110
        %v849 = vpop.permute.xlu0 %848
        %v850 = vrot.slane %v849, 4
        %vm851 = vcmask 900096
        %v852 = vsel %vm851, %v850, %v849
        %v855 = vmul.f32 %v846, %v852
        %v856 = vmul.f32 %v847, %v850
        %857 = vset.pattern.permute.xlu0 15
        %858 = vperm.xlu0 %857, %v349
        %v859 = vpop.permute.xlu0 %858
        %v863 = vcombine.high %v855, %v855
        %864 = vrot.lane.b32.xlu0 %v855, 18
        %v865 = vpop.permute.xlu0 %864
        %866 = vrot.lane.b32.xlu0 %v863, 18
        %v867 = vpop.permute.xlu0 %866
        %868 = vrot.lane.b32.xlu0 %v856, 18
        %v869 = vpop.permute.xlu0 %868
        %vm870 = vcmask 146432
        %v871 = vsel %vm870, %v865, %v867
        %v872 = vsel %vm870, %v867, %v869
        %v875 = vmul.f32 %v859, %v871
        %v876 = vmul.f32 %v859, %v872
        %v877 = vadd.f32 %v844, %v875
        %v878 = vadd.f32 %v845, %v876
        %v879 = vld [vmem:[#allocation2] sm:$0xff]
        %v880 = vld [vmem:[#allocation2 + $0x8] sm:$0xf]
        %881 = vrot.lane.b32.xlu0 %v427, 111
        %v882 = vpop.permute.xlu0 %881
        %v883 = vrot.slane %v882, 4
        %vm884 = vcmask 908288
        %v885 = vsel %vm884, %v883, %v882
        %v888 = vmul.f32 %v879, %v885
        %v889 = vmul.f32 %v880, %v883
        %890 = vset.pattern.permute.xlu0 16
        %891 = vperm.xlu0 %890, %v349
        %v892 = vpop.permute.xlu0 %891
        %v896 = vcombine.high %v888, %v888
        %897 = vrot.lane.b32.xlu0 %v888, 17
        %v898 = vpop.permute.xlu0 %897
        %899 = vrot.lane.b32.xlu0 %v896, 17
        %v900 = vpop.permute.xlu0 %899
        %901 = vrot.lane.b32.xlu0 %v889, 17
        %v902 = vpop.permute.xlu0 %901
        %vm903 = vcmask 138240
        %v904 = vsel %vm903, %v898, %v900
        %v905 = vsel %vm903, %v900, %v902
        %v908 = vmul.f32 %v892, %v904
        %v909 = vmul.f32 %v892, %v905
        %v910 = vadd.f32 %v877, %v908
        %v911 = vadd.f32 %v878, %v909
        %v912 = vld [vmem:[#allocation2] sm:$0xff]
        %v913 = vld [vmem:[#allocation2 + $0x8] sm:$0xf]
        %914 = vset.pattern.permute.xlu0 17
        %915 = vperm.xlu0 %914, %v349
        %v916 = vpop.permute.xlu0 %915
        %v920 = vcombine.high %v912, %v912
        %921 = vrot.lane.b32.xlu0 %v912, 16
        %v922 = vpop.permute.xlu0 %921
        %923 = vrot.lane.b32.xlu0 %v920, 16
        %v924 = vpop.permute.xlu0 %923
        %925 = vrot.lane.b32.xlu0 %v913, 16
        %v926 = vpop.permute.xlu0 %925
        %vm927 = vcmask 130048
        %v928 = vsel %vm927, %v922, %v924
        %v929 = vsel %vm927, %v924, %v926
        %v932 = vmul.f32 %v916, %v928
        %v933 = vmul.f32 %v916, %v929
        %v934 = vadd.f32 %v910, %v932
        %v935 = vadd.f32 %v911, %v933
        %v936 = vld [vmem:[#allocation2] sm:$0xff]
        %v937 = vld [vmem:[#allocation2 + $0x8] sm:$0xf]
        %938 = vrot.lane.b32.xlu0 %v487, 113
        %v939 = vpop.permute.xlu0 %938
        %v940 = vrot.slane %v939, 4
        %vm941 = vcmask 924672
        %v942 = vsel %vm941, %v940, %v939
        %v945 = vmul.f32 %v936, %v942
        %v946 = vmul.f32 %v937, %v940
        %947 = vset.pattern.permute.xlu0 18
        %948 = vperm.xlu0 %947, %v349
        %v949 = vpop.permute.xlu0 %948
        %v953 = vcombine.high %v945, %v945
        %954 = vrot.lane.b32.xlu0 %v945, 15
        %v955 = vpop.permute.xlu0 %954
        %956 = vrot.lane.b32.xlu0 %v953, 15
        %v957 = vpop.permute.xlu0 %956
        %958 = vrot.lane.b32.xlu0 %v946, 15
        %v959 = vpop.permute.xlu0 %958
        %vm960 = vcmask 121856
        %v961 = vsel %vm960, %v955, %v957
        %v962 = vsel %vm960, %v957, %v959
        %v965 = vmul.f32 %v949, %v961
        %v966 = vmul.f32 %v949, %v962
        %v967 = vadd.f32 %v934, %v965
        %v968 = vadd.f32 %v935, %v966
        %v969 = vld [vmem:[#allocation2] sm:$0xff]
        %v970 = vld [vmem:[#allocation2 + $0x8] sm:$0xf]
        %971 = vrot.lane.b32.xlu0 %v523, 114
        %v972 = vpop.permute.xlu0 %971
        %v973 = vrot.slane %v972, 4
        %vm974 = vcmask 932864
        %v975 = vsel %vm974, %v973, %v972
        %v978 = vmul.f32 %v969, %v975
        %v979 = vmul.f32 %v970, %v973
        %980 = vset.pattern.permute.xlu0 19
        %981 = vperm.xlu0 %980, %v349
        %v982 = vpop.permute.xlu0 %981
        %v986 = vcombine.high %v978, %v978
        %987 = vrot.lane.b32.xlu0 %v978, 14
        %v988 = vpop.permute.xlu0 %987
        %989 = vrot.lane.b32.xlu0 %v986, 14
        %v990 = vpop.permute.xlu0 %989
        %991 = vrot.lane.b32.xlu0 %v979, 14
        %v992 = vpop.permute.xlu0 %991
        %vm993 = vcmask 113664
        %v994 = vsel %vm993, %v988, %v990
        %v995 = vsel %vm993, %v990, %v992
        %v998 = vmul.f32 %v982, %v994
        %v999 = vmul.f32 %v982, %v995
        %v1000 = vadd.f32 %v967, %v998
        %v1001 = vadd.f32 %v968, %v999
        %v1002 = vld [vmem:[#allocation2] sm:$0xff]
        %v1003 = vld [vmem:[#allocation2 + $0x8] sm:$0xf]
        %1004 = vrot.lane.b32.xlu0 %v559, 115
        %v1005 = vpop.permute.xlu0 %1004
        %v1006 = vrot.slane %v1005, 4
        %vm1007 = vcmask 941056
        %v1008 = vsel %vm1007, %v1006, %v1005
        %v1011 = vmul.f32 %v1002, %v1008
        %v1012 = vmul.f32 %v1003, %v1006
        %1013 = vset.pattern.permute.xlu0 20
        %1014 = vperm.xlu0 %1013, %v349
        %v1015 = vpop.permute.xlu0 %1014
        %v1019 = vcombine.high %v1011, %v1011
        %1020 = vrot.lane.b32.xlu0 %v1011, 13
        %v1021 = vpop.permute.xlu0 %1020
        %1022 = vrot.lane.b32.xlu0 %v1019, 13
        %v1023 = vpop.permute.xlu0 %1022
        %1024 = vrot.lane.b32.xlu0 %v1012, 13
        %v1025 = vpop.permute.xlu0 %1024
        %vm1026 = vcmask 105472
        %v1027 = vsel %vm1026, %v1021, %v1023
        %v1028 = vsel %vm1026, %v1023, %v1025
        %v1031 = vmul.f32 %v1015, %v1027
        %v1032 = vmul.f32 %v1015, %v1028
        %v1033 = vadd.f32 %v1000, %v1031
        %v1034 = vadd.f32 %v1001, %v1032
        %v1035 = vld [vmem:[#allocation2] sm:$0xff]
        %v1036 = vld [vmem:[#allocation2 + $0x8] sm:$0xf]
        %1037 = vrot.lane.b32.xlu0 %v354, 125
        %v1038 = vpop.permute.xlu0 %1037
        %v1039 = vrot.slane %v1038, 4
        %vm1040 = vcmask 1022976
        %v1041 = vsel %vm1040, %v1039, %v1038
        %v1044 = vmul.f32 %v1035, %v1041
        %v1045 = vmul.f32 %v1036, %v1039
        %1046 = vset.pattern.permute.xlu0 21
        %1047 = vperm.xlu0 %1046, %v349
        %v1048 = vpop.permute.xlu0 %1047
        %v1052 = vcombine.high %v1044, %v1044
        %1053 = vrot.lane.b32.xlu0 %v1044, 3
        %v1054 = vpop.permute.xlu0 %1053
        %1055 = vrot.lane.b32.xlu0 %v1052, 3
        %v1056 = vpop.permute.xlu0 %1055
        %1057 = vrot.lane.b32.xlu0 %v1045, 3
        %v1058 = vpop.permute.xlu0 %1057
        %vm1059 = vcmask 23552
        %v1060 = vsel %vm1059, %v1054, %v1056
        %v1061 = vsel %vm1059, %v1056, %v1058
        %v1064 = vmul.f32 %v1048, %v1060
        %v1065 = vmul.f32 %v1048, %v1061
        %v1066 = vadd.f32 %v1033, %v1064
        %v1067 = vadd.f32 %v1034, %v1065
        %v1068 = vld [vmem:[#allocation2] sm:$0xff]
        %v1069 = vld [vmem:[#allocation2 + $0x8] sm:$0xf]
        %1070 = vrot.lane.b32.xlu0 %v391, 126
        %v1071 = vpop.permute.xlu0 %1070
        %v1072 = vrot.slane %v1071, 4
        %vm1073 = vcmask 1031168
        %v1074 = vsel %vm1073, %v1072, %v1071
        %v1077 = vmul.f32 %v1068, %v1074
        %v1078 = vmul.f32 %v1069, %v1072
        %1079 = vset.pattern.permute.xlu0 22
        %1080 = vperm.xlu0 %1079, %v349
        %v1081 = vpop.permute.xlu0 %1080
        %v1085 = vcombine.high %v1077, %v1077
        %1086 = vrot.lane.b32.xlu0 %v1077, 2
        %v1087 = vpop.permute.xlu0 %1086
        %1088 = vrot.lane.b32.xlu0 %v1085, 2
        %v1089 = vpop.permute.xlu0 %1088
        %1090 = vrot.lane.b32.xlu0 %v1078, 2
        %v1091 = vpop.permute.xlu0 %1090
        %vm1092 = vcmask 15360
        %v1093 = vsel %vm1092, %v1087, %v1089
        %v1094 = vsel %vm1092, %v1089, %v1091
        %v1097 = vmul.f32 %v1081, %v1093
        %v1098 = vmul.f32 %v1081, %v1094
        %v1099 = vadd.f32 %v1066, %v1097
        %v1100 = vadd.f32 %v1067, %v1098
        %v1101 = vld [vmem:[#allocation2] sm:$0xff]
        %v1102 = vld [vmem:[#allocation2 + $0x8] sm:$0xf]
        %1103 = vrot.lane.b32.xlu0 %v427, 127
        %v1104 = vpop.permute.xlu0 %1103
        %v1105 = vrot.slane %v1104, 4
        %vm1106 = vcmask 1039360
        %v1107 = vsel %vm1106, %v1105, %v1104
        %v1110 = vmul.f32 %v1101, %v1107
        %v1111 = vmul.f32 %v1102, %v1105
        %1112 = vset.pattern.permute.xlu0 23
        %1113 = vperm.xlu0 %1112, %v349
        %v1114 = vpop.permute.xlu0 %1113
        %v1118 = vcombine.high %v1110, %v1110
        %1119 = vrot.lane.b32.xlu0 %v1110, 1
        %v1120 = vpop.permute.xlu0 %1119
        %1121 = vrot.lane.b32.xlu0 %v1118, 1
        %v1122 = vpop.permute.xlu0 %1121
        %1123 = vrot.lane.b32.xlu0 %v1111, 1
        %v1124 = vpop.permute.xlu0 %1123
        %vm1125 = vcmask 7168
        %v1126 = vsel %vm1125, %v1120, %v1122
        %v1127 = vsel %vm1125, %v1122, %v1124
        %v1130 = vmul.f32 %v1114, %v1126
        %v1131 = vmul.f32 %v1114, %v1127
        %v1132 = vadd.f32 %v1099, %v1130
        %v1133 = vadd.f32 %v1100, %v1131
        %v1134 = vld [vmem:[#allocation2 + $0x4] sm:$0xff]
        %1135 = vset.pattern.permute.xlu0 24
        %1136 = vperm.xlu0 %1135, %v349
        %v1137 = vpop.permute.xlu0 %1136
        %v1140 = vcombine.high %v1134, %v1134
        %v1142 = vmul.f32 %v1137, %v1134
        %v1143 = vmul.f32 %v1137, %v1140
        %v1144 = vadd.f32 %v1132, %v1142
        %v1145 = vadd.f32 %v1133, %v1143
        %v1146 = vld [vmem:[#allocation2 + $0x4] sm:$0xff]
        %v1147 = vld [vmem:[#allocation2 + $0xc] sm:$0xf]
        %1148 = vrot.lane.b32.xlu0 %v487, 1
        %v1149 = vpop.permute.xlu0 %1148
        %v1150 = vrot.slane %v1149, 4
        %v1151 = vsel %vm1125, %v1150, %v1149
        %v1154 = vmul.f32 %v1146, %v1151
        %v1155 = vmul.f32 %v1147, %v1150
        %1156 = vset.pattern.permute.xlu0 25
        %1157 = vperm.xlu0 %1156, %v349
        %v1158 = vpop.permute.xlu0 %1157
        %v1162 = vcombine.high %v1154, %v1154
        %1163 = vrot.lane.b32.xlu0 %v1154, 127
        %v1164 = vpop.permute.xlu0 %1163
        %1165 = vrot.lane.b32.xlu0 %v1162, 127
        %v1166 = vpop.permute.xlu0 %1165
        %1167 = vrot.lane.b32.xlu0 %v1155, 127
        %v1168 = vpop.permute.xlu0 %1167
        %v1169 = vsel %vm1106, %v1164, %v1166
        %v1170 = vsel %vm1106, %v1166, %v1168
        %v1173 = vmul.f32 %v1158, %v1169
        %v1174 = vmul.f32 %v1158, %v1170
        %v1175 = vadd.f32 %v1144, %v1173
        %v1176 = vadd.f32 %v1145, %v1174
        %v1177 = vld [vmem:[#allocation2 + $0x4] sm:$0xff]
        %v1178 = vld [vmem:[#allocation2 + $0xc] sm:$0xf]
        %1179 = vrot.lane.b32.xlu0 %v523, 2
        %v1180 = vpop.permute.xlu0 %1179
        %v1181 = vrot.slane %v1180, 4
        %v1182 = vsel %vm1092, %v1181, %v1180
        %v1185 = vmul.f32 %v1177, %v1182
        %v1186 = vmul.f32 %v1178, %v1181
        %1187 = vset.pattern.permute.xlu0 26
        %1188 = vperm.xlu0 %1187, %v349
        %v1189 = vpop.permute.xlu0 %1188
        %v1193 = vcombine.high %v1185, %v1185
        %1194 = vrot.lane.b32.xlu0 %v1185, 126
        %v1195 = vpop.permute.xlu0 %1194
        %1196 = vrot.lane.b32.xlu0 %v1193, 126
        %v1197 = vpop.permute.xlu0 %1196
        %1198 = vrot.lane.b32.xlu0 %v1186, 126
        %v1199 = vpop.permute.xlu0 %1198
        %v1200 = vsel %vm1073, %v1195, %v1197
        %v1201 = vsel %vm1073, %v1197, %v1199
        %v1204 = vmul.f32 %v1189, %v1200
        %v1205 = vmul.f32 %v1189, %v1201
        %v1206 = vadd.f32 %v1175, %v1204
        %v1207 = vadd.f32 %v1176, %v1205
        %v1208 = vld [vmem:[#allocation2 + $0x4] sm:$0xff]
        %v1209 = vld [vmem:[#allocation2 + $0xc] sm:$0xf]
        %1210 = vrot.lane.b32.xlu0 %v559, 3
        %v1211 = vpop.permute.xlu0 %1210
        %v1212 = vrot.slane %v1211, 4
        %v1213 = vsel %vm1059, %v1212, %v1211
        %v1216 = vmul.f32 %v1208, %v1213
        %v1217 = vmul.f32 %v1209, %v1212
        %1218 = vset.pattern.permute.xlu0 27
        %1219 = vperm.xlu0 %1218, %v349
        %v1220 = vpop.permute.xlu0 %1219
        %v1224 = vcombine.high %v1216, %v1216
        %1225 = vrot.lane.b32.xlu0 %v1216, 125
        %v1226 = vpop.permute.xlu0 %1225
        %1227 = vrot.lane.b32.xlu0 %v1224, 125
        %v1228 = vpop.permute.xlu0 %1227
        %1229 = vrot.lane.b32.xlu0 %v1217, 125
        %v1230 = vpop.permute.xlu0 %1229
        %v1231 = vsel %vm1040, %v1226, %v1228
        %v1232 = vsel %vm1040, %v1228, %v1230
        %v1235 = vmul.f32 %v1220, %v1231
        %v1236 = vmul.f32 %v1220, %v1232
        %v1237 = vadd.f32 %v1206, %v1235
        %v1238 = vadd.f32 %v1207, %v1236
        %v1239 = vld [vmem:[#allocation2 + $0x4] sm:$0xff]
        %v1240 = vld [vmem:[#allocation2 + $0xc] sm:$0xf]
        %1241 = vrot.lane.b32.xlu0 %v354, 13
        %v1242 = vpop.permute.xlu0 %1241
        %v1243 = vrot.slane %v1242, 4
        %v1244 = vsel %vm1026, %v1243, %v1242
        %v1247 = vmul.f32 %v1239, %v1244
        %v1248 = vmul.f32 %v1240, %v1243
        %1249 = vset.pattern.permute.xlu0 28
        %1250 = vperm.xlu0 %1249, %v349
        %v1251 = vpop.permute.xlu0 %1250
        %v1255 = vcombine.high %v1247, %v1247
        %1256 = vrot.lane.b32.xlu0 %v1247, 115
        %v1257 = vpop.permute.xlu0 %1256
        %1258 = vrot.lane.b32.xlu0 %v1255, 115
        %v1259 = vpop.permute.xlu0 %1258
        %1260 = vrot.lane.b32.xlu0 %v1248, 115
        %v1261 = vpop.permute.xlu0 %1260
        %v1262 = vsel %vm1007, %v1257, %v1259
        %v1263 = vsel %vm1007, %v1259, %v1261
        %v1266 = vmul.f32 %v1251, %v1262
        %v1267 = vmul.f32 %v1251, %v1263
        %v1268 = vadd.f32 %v1237, %v1266
        %v1269 = vadd.f32 %v1238, %v1267
        %v1270 = vld [vmem:[#allocation2 + $0x4] sm:$0xff]
        %v1271 = vld [vmem:[#allocation2 + $0xc] sm:$0xf]
        %1272 = vrot.lane.b32.xlu0 %v391, 14
        %v1273 = vpop.permute.xlu0 %1272
        %v1274 = vrot.slane %v1273, 4
        %v1275 = vsel %vm993, %v1274, %v1273
        %v1278 = vmul.f32 %v1270, %v1275
        %v1279 = vmul.f32 %v1271, %v1274
        %1280 = vset.pattern.permute.xlu0 29
        %1281 = vperm.xlu0 %1280, %v349
        %v1282 = vpop.permute.xlu0 %1281
        %v1286 = vcombine.high %v1278, %v1278
        %1287 = vrot.lane.b32.xlu0 %v1278, 114
        %v1288 = vpop.permute.xlu0 %1287
        %1289 = vrot.lane.b32.xlu0 %v1286, 114
        %v1290 = vpop.permute.xlu0 %1289
        %1291 = vrot.lane.b32.xlu0 %v1279, 114
        %v1292 = vpop.permute.xlu0 %1291
        %v1293 = vsel %vm974, %v1288, %v1290
        %v1294 = vsel %vm974, %v1290, %v1292
        %v1297 = vmul.f32 %v1282, %v1293
        %v1298 = vmul.f32 %v1282, %v1294
        %v1299 = vadd.f32 %v1268, %v1297
        %v1300 = vadd.f32 %v1269, %v1298
        %v1301 = vld [vmem:[#allocation2 + $0x4] sm:$0xff]
        %v1302 = vld [vmem:[#allocation2 + $0xc] sm:$0xf]
        %1303 = vrot.lane.b32.xlu0 %v427, 15
        %v1304 = vpop.permute.xlu0 %1303
        %v1305 = vrot.slane %v1304, 4
        %v1306 = vsel %vm960, %v1305, %v1304
        %v1309 = vmul.f32 %v1301, %v1306
        %v1310 = vmul.f32 %v1302, %v1305
        %1311 = vset.pattern.permute.xlu0 30
        %1312 = vperm.xlu0 %1311, %v349
        %v1313 = vpop.permute.xlu0 %1312
        %v1317 = vcombine.high %v1309, %v1309
        %1318 = vrot.lane.b32.xlu0 %v1309, 113
        %v1319 = vpop.permute.xlu0 %1318
        %1320 = vrot.lane.b32.xlu0 %v1317, 113
        %v1321 = vpop.permute.xlu0 %1320
        %1322 = vrot.lane.b32.xlu0 %v1310, 113
        %v1323 = vpop.permute.xlu0 %1322
        %v1324 = vsel %vm941, %v1319, %v1321
        %v1325 = vsel %vm941, %v1321, %v1323
        %v1328 = vmul.f32 %v1313, %v1324
        %v1329 = vmul.f32 %v1313, %v1325
        %v1330 = vadd.f32 %v1299, %v1328
        %v1331 = vadd.f32 %v1300, %v1329
        %v1332 = vld [vmem:[#allocation2 + $0x4] sm:$0xff]
        %v1333 = vld [vmem:[#allocation2 + $0xc] sm:$0xf]
        %1334 = vset.pattern.permute.xlu0 31
        %1335 = vperm.xlu0 %1334, %v349
        %v1336 = vpop.permute.xlu0 %1335
        %v1340 = vcombine.high %v1332, %v1332
        %1341 = vrot.lane.b32.xlu0 %v1332, 112
        %v1342 = vpop.permute.xlu0 %1341
        %1343 = vrot.lane.b32.xlu0 %v1340, 112
        %v1344 = vpop.permute.xlu0 %1343
        %1345 = vrot.lane.b32.xlu0 %v1333, 112
        %v1346 = vpop.permute.xlu0 %1345
        %vm1347 = vcmask 916480
        %v1348 = vsel %vm1347, %v1342, %v1344
        %v1349 = vsel %vm1347, %v1344, %v1346
        %v1352 = vmul.f32 %v1336, %v1348
        %v1353 = vmul.f32 %v1336, %v1349
        %v1354 = vadd.f32 %v1330, %v1352
        %v1355 = vadd.f32 %v1331, %v1353
        %v1356 = vld [vmem:[#allocation2 + $0x4] sm:$0xff]
        %v1357 = vld [vmem:[#allocation2 + $0xc] sm:$0xf]
        %1358 = vrot.lane.b32.xlu0 %v487, 17
        %v1359 = vpop.permute.xlu0 %1358
        %v1360 = vrot.slane %v1359, 4
        %v1361 = vsel %vm903, %v1360, %v1359
        %v1364 = vmul.f32 %v1356, %v1361
        %v1365 = vmul.f32 %v1357, %v1360
        %1366 = vset.pattern.permute.xlu0 32
        %1367 = vperm.xlu0 %1366, %v349
        %v1368 = vpop.permute.xlu0 %1367
        %v1372 = vcombine.high %v1364, %v1364
        %1373 = vrot.lane.b32.xlu0 %v1364, 111
        %v1374 = vpop.permute.xlu0 %1373
        %1375 = vrot.lane.b32.xlu0 %v1372, 111
        %v1376 = vpop.permute.xlu0 %1375
        %1377 = vrot.lane.b32.xlu0 %v1365, 111
        %v1378 = vpop.permute.xlu0 %1377
        %v1379 = vsel %vm884, %v1374, %v1376
        %v1380 = vsel %vm884, %v1376, %v1378
        %v1383 = vmul.f32 %v1368, %v1379
        %v1384 = vmul.f32 %v1368, %v1380
        %v1385 = vadd.f32 %v1354, %v1383
        %v1386 = vadd.f32 %v1355, %v1384
        %v1387 = vld [vmem:[#allocation2 + $0x4] sm:$0xff]
        %v1388 = vld [vmem:[#allocation2 + $0xc] sm:$0xf]
        %1389 = vrot.lane.b32.xlu0 %v523, 18
        %v1390 = vpop.permute.xlu0 %1389
        %v1391 = vrot.slane %v1390, 4
        %v1392 = vsel %vm870, %v1391, %v1390
        %v1395 = vmul.f32 %v1387, %v1392
        %v1396 = vmul.f32 %v1388, %v1391
        %1397 = vset.pattern.permute.xlu0 33
        %1398 = vperm.xlu0 %1397, %v349
        %v1399 = vpop.permute.xlu0 %1398
        %v1403 = vcombine.high %v1395, %v1395
        %1404 = vrot.lane.b32.xlu0 %v1395, 110
        %v1405 = vpop.permute.xlu0 %1404
        %1406 = vrot.lane.b32.xlu0 %v1403, 110
        %v1407 = vpop.permute.xlu0 %1406
        %1408 = vrot.lane.b32.xlu0 %v1396, 110
        %v1409 = vpop.permute.xlu0 %1408
        %v1410 = vsel %vm851, %v1405, %v1407
        %v1411 = vsel %vm851, %v1407, %v1409
        %v1414 = vmul.f32 %v1399, %v1410
        %v1415 = vmul.f32 %v1399, %v1411
        %v1416 = vadd.f32 %v1385, %v1414
        %v1417 = vadd.f32 %v1386, %v1415
        %v1418 = vld [vmem:[#allocation2 + $0x4] sm:$0xff]
        %v1419 = vld [vmem:[#allocation2 + $0xc] sm:$0xf]
        %1420 = vrot.lane.b32.xlu0 %v559, 19
        %v1421 = vpop.permute.xlu0 %1420
        %v1422 = vrot.slane %v1421, 4
        %v1423 = vsel %vm837, %v1422, %v1421
        %v1426 = vmul.f32 %v1418, %v1423
        %v1427 = vmul.f32 %v1419, %v1422
        %1428 = vset.pattern.permute.xlu0 34
        %1429 = vperm.xlu0 %1428, %v349
        %v1430 = vpop.permute.xlu0 %1429
        %v1434 = vcombine.high %v1426, %v1426
        %1435 = vrot.lane.b32.xlu0 %v1426, 109
        %v1436 = vpop.permute.xlu0 %1435
        %1437 = vrot.lane.b32.xlu0 %v1434, 109
        %v1438 = vpop.permute.xlu0 %1437
        %1439 = vrot.lane.b32.xlu0 %v1427, 109
        %v1440 = vpop.permute.xlu0 %1439
        %v1441 = vsel %vm818, %v1436, %v1438
        %v1442 = vsel %vm818, %v1438, %v1440
        %v1445 = vmul.f32 %v1430, %v1441
        %v1446 = vmul.f32 %v1430, %v1442
        %v1447 = vadd.f32 %v1416, %v1445
        %v1448 = vadd.f32 %v1417, %v1446
        %v1449 = vld [vmem:[#allocation2 + $0x4] sm:$0xff]
        %v1450 = vld [vmem:[#allocation2 + $0xc] sm:$0xf]
        %1451 = vrot.lane.b32.xlu0 %v354, 29
        %v1452 = vpop.permute.xlu0 %1451
        %v1453 = vrot.slane %v1452, 4
        %v1454 = vsel %vm804, %v1453, %v1452
        %v1457 = vmul.f32 %v1449, %v1454
        %v1458 = vmul.f32 %v1450, %v1453
        %1459 = vset.pattern.permute.xlu0 35
        %1460 = vperm.xlu0 %1459, %v349
        %v1461 = vpop.permute.xlu0 %1460
        %v1465 = vcombine.high %v1457, %v1457
        %1466 = vrot.lane.b32.xlu0 %v1457, 99
        %v1467 = vpop.permute.xlu0 %1466
        %1468 = vrot.lane.b32.xlu0 %v1465, 99
        %v1469 = vpop.permute.xlu0 %1468
        %1470 = vrot.lane.b32.xlu0 %v1458, 99
        %v1471 = vpop.permute.xlu0 %1470
        %v1472 = vsel %vm785, %v1467, %v1469
        %v1473 = vsel %vm785, %v1469, %v1471
        %v1476 = vmul.f32 %v1461, %v1472
        %v1477 = vmul.f32 %v1461, %v1473
        %v1478 = vadd.f32 %v1447, %v1476
        %v1479 = vadd.f32 %v1448, %v1477
        %v1480 = vld [vmem:[#allocation2 + $0x4] sm:$0xff]
        %v1481 = vld [vmem:[#allocation2 + $0xc] sm:$0xf]
        %1482 = vrot.lane.b32.xlu0 %v391, 30
        %v1483 = vpop.permute.xlu0 %1482
        %v1484 = vrot.slane %v1483, 4
        %v1485 = vsel %vm771, %v1484, %v1483
        %v1488 = vmul.f32 %v1480, %v1485
        %v1489 = vmul.f32 %v1481, %v1484
        %1490 = vset.pattern.permute.xlu0 36
        %1491 = vperm.xlu0 %1490, %v349
        %v1492 = vpop.permute.xlu0 %1491
        %v1496 = vcombine.high %v1488, %v1488
        %1497 = vrot.lane.b32.xlu0 %v1488, 98
        %v1498 = vpop.permute.xlu0 %1497
        %1499 = vrot.lane.b32.xlu0 %v1496, 98
        %v1500 = vpop.permute.xlu0 %1499
        %1501 = vrot.lane.b32.xlu0 %v1489, 98
        %v1502 = vpop.permute.xlu0 %1501
        %v1503 = vsel %vm752, %v1498, %v1500
        %v1504 = vsel %vm752, %v1500, %v1502
        %v1507 = vmul.f32 %v1492, %v1503
        %v1508 = vmul.f32 %v1492, %v1504
        %v1509 = vadd.f32 %v1478, %v1507
        %v1510 = vadd.f32 %v1479, %v1508
        %v1511 = vld [vmem:[#allocation2 + $0x4] sm:$0xff]
        %v1512 = vld [vmem:[#allocation2 + $0xc] sm:$0xf]
        %1513 = vrot.lane.b32.xlu0 %v427, 31
        %v1514 = vpop.permute.xlu0 %1513
        %v1515 = vrot.slane %v1514, 4
        %v1516 = vsel %vm738, %v1515, %v1514
        %v1519 = vmul.f32 %v1511, %v1516
        %v1520 = vmul.f32 %v1512, %v1515
        %1521 = vset.pattern.permute.xlu0 37
        %1522 = vperm.xlu0 %1521, %v349
        %v1523 = vpop.permute.xlu0 %1522
        %v1527 = vcombine.high %v1519, %v1519
        %1528 = vrot.lane.b32.xlu0 %v1519, 97
        %v1529 = vpop.permute.xlu0 %1528
        %1530 = vrot.lane.b32.xlu0 %v1527, 97
        %v1531 = vpop.permute.xlu0 %1530
        %1532 = vrot.lane.b32.xlu0 %v1520, 97
        %v1533 = vpop.permute.xlu0 %1532
        %v1534 = vsel %vm719, %v1529, %v1531
        %v1535 = vsel %vm719, %v1531, %v1533
        %v1538 = vmul.f32 %v1523, %v1534
        %v1539 = vmul.f32 %v1523, %v1535
        %v1540 = vadd.f32 %v1509, %v1538
        %v1541 = vadd.f32 %v1510, %v1539
        %v1542 = vld [vmem:[#allocation2 + $0x4] sm:$0xff]
        %v1543 = vld [vmem:[#allocation2 + $0xc] sm:$0xf]
        %1544 = vset.pattern.permute.xlu0 38
        %1545 = vperm.xlu0 %1544, %v349
        %v1546 = vpop.permute.xlu0 %1545
        %v1550 = vcombine.high %v1542, %v1542
        %1551 = vrot.lane.b32.xlu0 %v1542, 96
        %v1552 = vpop.permute.xlu0 %1551
        %1553 = vrot.lane.b32.xlu0 %v1550, 96
        %v1554 = vpop.permute.xlu0 %1553
        %1555 = vrot.lane.b32.xlu0 %v1543, 96
        %v1556 = vpop.permute.xlu0 %1555
        %vm1557 = vcmask 785408
        %v1558 = vsel %vm1557, %v1552, %v1554
        %v1559 = vsel %vm1557, %v1554, %v1556
        %v1562 = vmul.f32 %v1546, %v1558
        %v1563 = vmul.f32 %v1546, %v1559
        %v1564 = vadd.f32 %v1540, %v1562
        %v1565 = vadd.f32 %v1541, %v1563
        %v1566 = vld [vmem:[#allocation2 + $0x4] sm:$0xff]
        %v1567 = vld [vmem:[#allocation2 + $0xc] sm:$0xf]
        %1568 = vrot.lane.b32.xlu0 %v487, 33
        %v1569 = vpop.permute.xlu0 %1568
        %v1570 = vrot.slane %v1569, 4
        %v1571 = vsel %vm681, %v1570, %v1569
        %v1574 = vmul.f32 %v1566, %v1571
        %v1575 = vmul.f32 %v1567, %v1570
        %1576 = vset.pattern.permute.xlu0 39
        %1577 = vperm.xlu0 %1576, %v349
        %v1578 = vpop.permute.xlu0 %1577
        %v1582 = vcombine.high %v1574, %v1574
        %1583 = vrot.lane.b32.xlu0 %v1574, 95
        %v1584 = vpop.permute.xlu0 %1583
        %1585 = vrot.lane.b32.xlu0 %v1582, 95
        %v1586 = vpop.permute.xlu0 %1585
        %1587 = vrot.lane.b32.xlu0 %v1575, 95
        %v1588 = vpop.permute.xlu0 %1587
        %v1589 = vsel %vm662, %v1584, %v1586
        %v1590 = vsel %vm662, %v1586, %v1588
        %v1593 = vmul.f32 %v1578, %v1589
        %v1594 = vmul.f32 %v1578, %v1590
        %v1595 = vadd.f32 %v1564, %v1593
        %v1596 = vadd.f32 %v1565, %v1594
        %v1597 = vld [vmem:[#allocation2 + $0x4] sm:$0xff]
        %v1598 = vld [vmem:[#allocation2 + $0xc] sm:$0xf]
        %1599 = vrot.lane.b32.xlu0 %v523, 34
        %v1600 = vpop.permute.xlu0 %1599
        %v1601 = vrot.slane %v1600, 4
        %v1602 = vsel %vm648, %v1601, %v1600
        %v1605 = vmul.f32 %v1597, %v1602
        %v1606 = vmul.f32 %v1598, %v1601
        %1607 = vset.pattern.permute.xlu0 40
        %1608 = vperm.xlu0 %1607, %v349
        %v1609 = vpop.permute.xlu0 %1608
        %v1613 = vcombine.high %v1605, %v1605
        %1614 = vrot.lane.b32.xlu0 %v1605, 94
        %v1615 = vpop.permute.xlu0 %1614
        %1616 = vrot.lane.b32.xlu0 %v1613, 94
        %v1617 = vpop.permute.xlu0 %1616
        %1618 = vrot.lane.b32.xlu0 %v1606, 94
        %v1619 = vpop.permute.xlu0 %1618
        %v1620 = vsel %vm629, %v1615, %v1617
        %v1621 = vsel %vm629, %v1617, %v1619
        %v1624 = vmul.f32 %v1609, %v1620
        %v1625 = vmul.f32 %v1609, %v1621
        %v1626 = vadd.f32 %v1595, %v1624
        %v1627 = vadd.f32 %v1596, %v1625
        %v1628 = vld [vmem:[#allocation2 + $0x4] sm:$0xff]
        %v1629 = vld [vmem:[#allocation2 + $0xc] sm:$0xf]
        %1630 = vrot.lane.b32.xlu0 %v559, 35
        %v1631 = vpop.permute.xlu0 %1630
        %v1632 = vrot.slane %v1631, 4
        %v1633 = vsel %vm615, %v1632, %v1631
        %v1636 = vmul.f32 %v1628, %v1633
        %v1637 = vmul.f32 %v1629, %v1632
        %1638 = vset.pattern.permute.xlu0 41
        %1639 = vperm.xlu0 %1638, %v349
        %v1640 = vpop.permute.xlu0 %1639
        %v1644 = vcombine.high %v1636, %v1636
        %1645 = vrot.lane.b32.xlu0 %v1636, 93
        %v1646 = vpop.permute.xlu0 %1645
        %1647 = vrot.lane.b32.xlu0 %v1644, 93
        %v1648 = vpop.permute.xlu0 %1647
        %1649 = vrot.lane.b32.xlu0 %v1637, 93
        %v1650 = vpop.permute.xlu0 %1649
        %v1651 = vsel %vm596, %v1646, %v1648
        %v1652 = vsel %vm596, %v1648, %v1650
        %v1655 = vmul.f32 %v1640, %v1651
        %v1656 = vmul.f32 %v1640, %v1652
        %v1657 = vadd.f32 %v1626, %v1655
        %v1658 = vadd.f32 %v1627, %v1656
        %v1659 = vld [vmem:[#allocation2 + $0x4] sm:$0xff]
        %v1660 = vld [vmem:[#allocation2 + $0xc] sm:$0xf]
        %1661 = vrot.lane.b32.xlu0 %v354, 45
        %v1662 = vpop.permute.xlu0 %1661
        %v1663 = vrot.slane %v1662, 4
        %v1664 = vsel %vm582, %v1663, %v1662
        %v1667 = vmul.f32 %v1659, %v1664
        %v1668 = vmul.f32 %v1660, %v1663
        %1669 = vset.pattern.permute.xlu0 42
        %1670 = vperm.xlu0 %1669, %v349
        %v1671 = vpop.permute.xlu0 %1670
        %v1675 = vcombine.high %v1667, %v1667
        %1676 = vrot.lane.b32.xlu0 %v1667, 83
        %v1677 = vpop.permute.xlu0 %1676
        %1678 = vrot.lane.b32.xlu0 %v1675, 83
        %v1679 = vpop.permute.xlu0 %1678
        %1680 = vrot.lane.b32.xlu0 %v1668, 83
        %v1681 = vpop.permute.xlu0 %1680
        %v1682 = vsel %vm563, %v1677, %v1679
        %v1683 = vsel %vm563, %v1679, %v1681
        %v1686 = vmul.f32 %v1671, %v1682
        %v1687 = vmul.f32 %v1671, %v1683
        %v1688 = vadd.f32 %v1657, %v1686
        %v1689 = vadd.f32 %v1658, %v1687
        %v1690 = vld [vmem:[#allocation2 + $0x4] sm:$0xff]
        %v1691 = vld [vmem:[#allocation2 + $0xc] sm:$0xf]
        %1692 = vrot.lane.b32.xlu0 %v391, 46
        %v1693 = vpop.permute.xlu0 %1692
        %v1694 = vrot.slane %v1693, 4
        %v1695 = vsel %vm546, %v1694, %v1693
        %v1698 = vmul.f32 %v1690, %v1695
        %v1699 = vmul.f32 %v1691, %v1694
        %1700 = vset.pattern.permute.xlu0 43
        %1701 = vperm.xlu0 %1700, %v349
        %v1702 = vpop.permute.xlu0 %1701
        %v1706 = vcombine.high %v1698, %v1698
        %1707 = vrot.lane.b32.xlu0 %v1698, 82
        %v1708 = vpop.permute.xlu0 %1707
        %1709 = vrot.lane.b32.xlu0 %v1706, 82
        %v1710 = vpop.permute.xlu0 %1709
        %1711 = vrot.lane.b32.xlu0 %v1699, 82
        %v1712 = vpop.permute.xlu0 %1711
        %v1713 = vsel %vm527, %v1708, %v1710
        %v1714 = vsel %vm527, %v1710, %v1712
        %v1717 = vmul.f32 %v1702, %v1713
        %v1718 = vmul.f32 %v1702, %v1714
        %v1719 = vadd.f32 %v1688, %v1717
        %v1720 = vadd.f32 %v1689, %v1718
        %v1721 = vld [vmem:[#allocation2 + $0x4] sm:$0xff]
        %v1722 = vld [vmem:[#allocation2 + $0xc] sm:$0xf]
        %1723 = vrot.lane.b32.xlu0 %v427, 47
        %v1724 = vpop.permute.xlu0 %1723
        %v1725 = vrot.slane %v1724, 4
        %v1726 = vsel %vm510, %v1725, %v1724
        %v1729 = vmul.f32 %v1721, %v1726
        %v1730 = vmul.f32 %v1722, %v1725
        %1731 = vset.pattern.permute.xlu0 44
        %1732 = vperm.xlu0 %1731, %v349
        %v1733 = vpop.permute.xlu0 %1732
        %v1737 = vcombine.high %v1729, %v1729
        %1738 = vrot.lane.b32.xlu0 %v1729, 81
        %v1739 = vpop.permute.xlu0 %1738
        %1740 = vrot.lane.b32.xlu0 %v1737, 81
        %v1741 = vpop.permute.xlu0 %1740
        %1742 = vrot.lane.b32.xlu0 %v1730, 81
        %v1743 = vpop.permute.xlu0 %1742
        %v1744 = vsel %vm491, %v1739, %v1741
        %v1745 = vsel %vm491, %v1741, %v1743
        %v1748 = vmul.f32 %v1733, %v1744
        %v1749 = vmul.f32 %v1733, %v1745
        %v1750 = vadd.f32 %v1719, %v1748
        %v1751 = vadd.f32 %v1720, %v1749
        %v1752 = vld [vmem:[#allocation2 + $0x4] sm:$0xff]
        %v1753 = vld [vmem:[#allocation2 + $0xc] sm:$0xf]
        %1754 = vset.pattern.permute.xlu0 45
        %1755 = vperm.xlu0 %1754, %v349
        %v1756 = vpop.permute.xlu0 %1755
        %v1760 = vcombine.high %v1752, %v1752
        %1761 = vrot.lane.b32.xlu0 %v1752, 80
        %v1762 = vpop.permute.xlu0 %1761
        %1763 = vrot.lane.b32.xlu0 %v1760, 80
        %v1764 = vpop.permute.xlu0 %1763
        %1765 = vrot.lane.b32.xlu0 %v1753, 80
        %v1766 = vpop.permute.xlu0 %1765
        %vm1767 = vcmask 654336
        %v1768 = vsel %vm1767, %v1762, %v1764
        %v1769 = vsel %vm1767, %v1764, %v1766
        %v1772 = vmul.f32 %v1756, %v1768
        %v1773 = vmul.f32 %v1756, %v1769
        %v1774 = vadd.f32 %v1750, %v1772
        %v1775 = vadd.f32 %v1751, %v1773
        %v1776 = vld [vmem:[#allocation2 + $0x4] sm:$0xff]
        %v1777 = vld [vmem:[#allocation2 + $0xc] sm:$0xf]
        %1778 = vrot.lane.b32.xlu0 %v487, 49
        %v1779 = vpop.permute.xlu0 %1778
        %v1780 = vrot.slane %v1779, 4
        %v1781 = vsel %vm450, %v1780, %v1779
        %v1784 = vmul.f32 %v1776, %v1781
        %v1785 = vmul.f32 %v1777, %v1780
        %1786 = vset.pattern.permute.xlu0 46
        %1787 = vperm.xlu0 %1786, %v349
        %v1788 = vpop.permute.xlu0 %1787
        %v1792 = vcombine.high %v1784, %v1784
        %1793 = vrot.lane.b32.xlu0 %v1784, 79
        %v1794 = vpop.permute.xlu0 %1793
        %1795 = vrot.lane.b32.xlu0 %v1792, 79
        %v1796 = vpop.permute.xlu0 %1795
        %1797 = vrot.lane.b32.xlu0 %v1785, 79
        %v1798 = vpop.permute.xlu0 %1797
        %v1799 = vsel %vm431, %v1794, %v1796
        %v1800 = vsel %vm431, %v1796, %v1798
        %v1803 = vmul.f32 %v1788, %v1799
        %v1804 = vmul.f32 %v1788, %v1800
        %v1805 = vadd.f32 %v1774, %v1803
        %v1806 = vadd.f32 %v1775, %v1804
        %v1807 = vld [vmem:[#allocation2 + $0x4] sm:$0xff]
        %v1808 = vld [vmem:[#allocation2 + $0xc] sm:$0xf]
        %1809 = vrot.lane.b32.xlu0 %v523, 50
        %v1810 = vpop.permute.xlu0 %1809
        %v1811 = vrot.slane %v1810, 4
        %v1812 = vsel %vm414, %v1811, %v1810
        %v1815 = vmul.f32 %v1807, %v1812
        %v1816 = vmul.f32 %v1808, %v1811
        %1817 = vset.pattern.permute.xlu0 47
        %1818 = vperm.xlu0 %1817, %v349
        %v1819 = vpop.permute.xlu0 %1818
        %v1823 = vcombine.high %v1815, %v1815
        %1824 = vrot.lane.b32.xlu0 %v1815, 78
        %v1825 = vpop.permute.xlu0 %1824
        %1826 = vrot.lane.b32.xlu0 %v1823, 78
        %v1827 = vpop.permute.xlu0 %1826
        %1828 = vrot.lane.b32.xlu0 %v1816, 78
        %v1829 = vpop.permute.xlu0 %1828
        %v1830 = vsel %vm395, %v1825, %v1827
        %v1831 = vsel %vm395, %v1827, %v1829
        %v1834 = vmul.f32 %v1819, %v1830
        %v1835 = vmul.f32 %v1819, %v1831
        %v1836 = vadd.f32 %v1805, %v1834
        %v1837 = vadd.f32 %v1806, %v1835
        %v1838 = vld [vmem:[#allocation2 + $0x4] sm:$0xff]
        %v1839 = vld [vmem:[#allocation2 + $0xc] sm:$0xf]
        %1840 = vrot.lane.b32.xlu0 %v559, 51
        %v1841 = vpop.permute.xlu0 %1840
        %v1842 = vrot.slane %v1841, 4
        %v1843 = vsel %vm378, %v1842, %v1841
        %v1846 = vmul.f32 %v1838, %v1843
        %v1847 = vmul.f32 %v1839, %v1842
        %1848 = vset.pattern.permute.xlu0 48
        %1849 = vperm.xlu0 %1848, %v349
        %v1850 = vpop.permute.xlu0 %1849
        %v1854 = vcombine.high %v1846, %v1846
        %1855 = vrot.lane.b32.xlu0 %v1846, 77
        %v1856 = vpop.permute.xlu0 %1855
        %1857 = vrot.lane.b32.xlu0 %v1854, 77
        %v1858 = vpop.permute.xlu0 %1857
        %1859 = vrot.lane.b32.xlu0 %v1847, 77
        %v1860 = vpop.permute.xlu0 %1859
        %v1861 = vsel %vm358, %v1856, %v1858
        %v1862 = vsel %vm358, %v1858, %v1860
        %v1865 = vmul.f32 %v1850, %v1861
        %v1866 = vmul.f32 %v1850, %v1862
        %v1867 = vadd.f32 %v1836, %v1865
        %v1868 = vadd.f32 %v1837, %v1866
        %v1869 = vsel %vm218, %v1867, 0.0
        %v1870 = vrot.slane %v1869, 4
        %v1871 = vadd.f32 %v1869, %v1870
        %v1872 = vrot.slane %v1871, 2
        %v1873 = vadd.f32 %v1871, %v1872
        %v1874 = vrot.slane %v1873, 1
        %v1875 = vadd.f32 %v1873, %v1874
        %v1876 = vsel %vm218, %v1868, 0.0
        %v1877 = vrot.slane %v1876, 4
        %v1878 = vadd.f32 %v1876, %v1877
        %v1879 = vrot.slane %v1878, 2
        %v1880 = vadd.f32 %v1878, %v1879
        %v1881 = vrot.slane %v1880, 1
        %v1882 = vadd.f32 %v1880, %v1881
        %v1883 = vxor.u32 %v1875, 2147483648
        %v1884 = vxor.u32 %v1882, 2147483648
        %v1885 = vmul.f32 %v1883, 1.442695
        %v1886 = vpow.pop %v1885
        %v1887 = vmul.f32 %v1884, 1.442695
        %v1888 = vpow.pop %v1887
        %v1889 = vadd.f32 %v1886, 1.0
        %v1890 = vadd.f32 %v1888, 1.0
        %v1891 = vrcp.pop %v1889
        %v1892 = vmul.f32 1.0, %v1891
        %v1893 = vrcp.pop %v1890
        %v1894 = vmul.f32 1.0, %v1893
        %v1895 = vadd.f32 %v246, %v1892
        %v1896 = vadd.f32 %v246, %v1894
        %v1899 = vcombine.low %v1895, %v1896
        %v1901 = vmul.f32 %v214, %v1899
        %1902 = vst [vmem:[%s213] sm:$0xff] %v1901
        %s1903 = sand.u32 %s118, 1
        %s1904 = scalar_lea.sflag [#allocation5], %s1903
        %s1905 = sand.u32 %s118, 1
        %s1906 = smul.addr %s1905, 8
        %s1907 = scalar_lea.vmem [#allocation6], %s1906
        // Predicated region
        $region41: #{tpu_custom_call.1} parent=35 // pred_check
          %p1908 = pneg %p128
        $region42: #{tpu_custom_call.1} parent=35 // pred_check_branch
          %1910 = sbr.rel (%p1908) target = $region44
        $region43: #{tpu_custom_call.1} parent=35 // pred_region
          %s1912 = ssub.s32 128, 128
          %1913 = vsyncadd %s1904, %s1912
          %s1914 = smul.addr %s21, 2
          %s1915 = smul.addr %s1914, 64
          %s1916 = scalar_lea.hbm %s4, %s1915
          %s1918 = sshll.u32 %s1907, 4
          %s1919 = int_to_ptr.vmem [resolvable:$true] %s1918
          %1921 = dma.vmem_to_hbm [thread:$0]  %s1919, 128, %s1916, %s1904
        $region44: #{tpu_custom_call.1} parent=35 // pred_fallthru
          _
      $region36: #{tpu_custom_call.1} parent=5 // pred_fallthru
        _
      %p1922 = scmp.le.s32.totalorder 2, %s16
      // Predicated region
      $region45: #{tpu_custom_call.1} parent=5 // pred_check
        %p1923 = pneg %p1922
      $region46: #{tpu_custom_call.1} parent=5 // pred_check_branch
        %1925 = sbr.rel (%p1923) target = $region48
      $region47: #{tpu_custom_call.1} parent=5 // pred_region
        %s1926 = ssub.s32 %s16, 2
        // Predicated region
        $region49: #{tpu_custom_call.1} parent=47 // pred_check
          %p1927 = pneg %p134
        $region50: #{tpu_custom_call.1} parent=47 // pred_check_branch
          %1929 = sbr.rel (%p1927) target = $region52
        $region51: #{tpu_custom_call.1} parent=47 // pred_region
          %s1930 = sand.u32 %s119, 1
          %s1931 = scalar_lea.sflag [#allocation5], %s1930
          %s1932 = sand.u32 %s119, 1
          %s1933 = smul.addr %s1932, 8
          %s1934 = scalar_lea.vmem [#allocation6], %s1933
          %1935 = dma.done %s1931, 128
        $region52: #{tpu_custom_call.1} parent=47 // pred_fallthru
          _
      $region48: #{tpu_custom_call.1} parent=5 // pred_fallthru
        _
    $region6: #{tpu_custom_call.1} parent=1 // loop_footer
      %s20 = sadd.s32 1, %s16
    $region7: #{tpu_custom_call.1} parent=1 // loop_footer_branch
      %15 = sbr.rel target = $region3
    $region8: #{tpu_custom_call.1} parent=1 // loop_exit
      _
    %1936 = vsyncpa [#allocation4], 1
    %s1937 = scalar_lea.sflag [#allocation4], 1
    %1938 = vsyncpa %s1937, 1
    %1939 = vsyncpa [#allocation5], 1
    %s1940 = scalar_lea.sflag [#allocation5], 1
    %1941 = vsyncpa %s1940, 1

</llo_original>
